<compile_context>
chip_gen: v6e
topology: v6e:2x2x1
jax: 0.10.0
libtpu: 0.0.40
codegen_flags: <defaults>
</compile_context>

<pallas_src>
import jax
import jax.numpy as jnp
from jax.experimental import pallas as pl
from jax.experimental.pallas import tpu as pltpu


def _dqn_kernel(x_ref,
                w1_ref, b1_ref,
                w2_ref, b2_ref,
                w3_ref, b3_ref,
                w4_ref, b4_ref,
                w5_ref, b5_ref,
                o_ref):
    """Fused 5-layer MLP over one (TM, n_in) batch tile.

    Dots run in bf16 on the MXU with f32 accumulation; biases added in f32;
    ReLU outputs are cast back to bf16 before the next dot.
    """
    x = x_ref[...]  # bf16 (TM, n_in)

    h = jnp.dot(x, w1_ref[...], preferred_element_type=jnp.float32) + b1_ref[...]
    h = jnp.maximum(h, 0.0).astype(jnp.bfloat16)

    h = jnp.dot(h, w2_ref[...], preferred_element_type=jnp.float32) + b2_ref[...]
    h = jnp.maximum(h, 0.0).astype(jnp.bfloat16)

    h = jnp.dot(h, w3_ref[...], preferred_element_type=jnp.float32) + b3_ref[...]
    h = jnp.maximum(h, 0.0).astype(jnp.bfloat16)

    h = jnp.dot(h, w4_ref[...], preferred_element_type=jnp.float32) + b4_ref[...]
    h = jnp.maximum(h, 0.0).astype(jnp.bfloat16)

    out = jnp.dot(h, w5_ref[...], preferred_element_type=jnp.float32) + b5_ref[...]
    o_ref[...] = out.astype(o_ref.dtype)  # bf16 writeback


def _round_up(n, m):
    return ((n + m - 1) // m) * m


def _pad_cols(a, target):
    pad = target - a.shape[-1]
    if pad <= 0:
        return a
    return jnp.pad(a, [(0, 0)] * (a.ndim - 1) + [(0, pad)])


def _pad_rows(a, target):
    pad = target - a.shape[0]
    if pad <= 0:
        return a
    return jnp.pad(a, [(0, pad)] + [(0, 0)] * (a.ndim - 1))


def _choose_tm(b):
    """Batch-tile rows. Small b: one 16-aligned tile (bf16 sublane packing).
    Larger b: >=2 tiles of <=512 rows (dual-TC sharding + per-step overhead
    amortization, safe for v5e's 16 MiB scoped VMEM)."""
    if b <= 128:
        return _round_up(max(b, 1), 16)
    return min(512, _round_up((b + 1) // 2, 128))


def prepare_params(params):
    """One-time weight prep (cast to bf16 + pad narrow layers to 128 lanes).

    Call at init / target-network-update time, NOT per forward pass."""
    (w1, b1), (w2, b2), (w3, b3), (w4, b4), (w5, b5) = params
    w1p = w1.astype(jnp.bfloat16)                                   # (n_in, 512)
    w2p = w2.astype(jnp.bfloat16)                                   # (512, 512)
    w3p = w3.astype(jnp.bfloat16)                                   # (512, 512)
    w4p = _pad_cols(w4.astype(jnp.bfloat16), 128)                   # (512, 128)
    w5p = _pad_cols(_pad_rows(w5.astype(jnp.bfloat16), 128), 128)   # (128, 128)
    b1p = b1.astype(jnp.float32).reshape(1, -1)                     # (1, 512)
    b2p = b2.astype(jnp.float32).reshape(1, -1)
    b3p = b3.astype(jnp.float32).reshape(1, -1)
    b4p = _pad_cols(b4.astype(jnp.float32).reshape(1, -1), 128)     # (1, 128)
    b5p = _pad_cols(b5.astype(jnp.float32).reshape(1, -1), 128)     # (1, 128)
    return (w1p, b1p, w2p, b2p, w3p, b3p, w4p, b4p, w5p, b5p)


def dqn_forward(x, prepared):
    """x: (B, ...) flattened to (B, n_inputs). Returns (B, 5) float32 logits."""
    w1p, b1p, w2p, b2p, w3p, b3p, w4p, b4p, w5p, b5p = prepared

    b = x.shape[0]
    x2 = x.reshape(b, -1)
    n_in = x2.shape[1]
    assert w1p.shape[0] == n_in, (w1p.shape, n_in)

    tm = _choose_tm(b)
    bp = _round_up(b, tm)
    xp = _pad_rows(x2.astype(jnp.bfloat16), bp)     # (bp, n_in), bf16
    grid = (bp // tm,)

    # Padded-layer FLOPs actually executed by the kernel.
    flops = 2 * bp * (n_in * 512 + 512 * 512 + 512 * 512 + 512 * 128 + 128 * 128)
    weight_bytes = sum(int(w.size) * 2 for w in (w1p, w2p, w3p, w4p, w5p)) + \
                   sum(int(bb.size) * 4 for bb in (b1p, b2p, b3p, b4p, b5p))
    bytes_accessed = int(xp.size) * 2 + bp * 128 * 2 + weight_bytes

    out_padded = pl.pallas_call(
        _dqn_kernel,
        out_shape=jax.ShapeDtypeStruct((bp, 128), jnp.bfloat16),
        grid=grid,
        in_specs=[
            # x tile marches over the batch; weights/biases stay VMEM-resident
            # (constant index_map -> fetched once).
            pl.BlockSpec((tm, n_in), lambda i: (i, 0)),
            pl.BlockSpec((n_in, 512), lambda i: (0, 0)),
            pl.BlockSpec((1, 512), lambda i: (0, 0)),
            pl.BlockSpec((512, 512), lambda i: (0, 0)),
            pl.BlockSpec((1, 512), lambda i: (0, 0)),
            pl.BlockSpec((512, 512), lambda i: (0, 0)),
            pl.BlockSpec((1, 512), lambda i: (0, 0)),
            pl.BlockSpec((512, 128), lambda i: (0, 0)),
            pl.BlockSpec((1, 128), lambda i: (0, 0)),
            pl.BlockSpec((128, 128), lambda i: (0, 0)),
            pl.BlockSpec((1, 128), lambda i: (0, 0)),
        ],
        out_specs=pl.BlockSpec((tm, 128), lambda i: (i, 0)),
        compiler_params=pltpu.CompilerParams(
            dimension_semantics=("parallel",)),
        cost_estimate=pl.CostEstimate(
            flops=flops, transcendentals=0, bytes_accessed=bytes_accessed),
    )(xp, w1p, b1p, w2p, b2p, w3p, b3p, w4p, b4p, w5p, b5p)

    return out_padded[:b, :5].astype(jnp.float32)


def init_params(key, n_inputs):
    """Deterministic init mimicking torch.nn.Linear default (U[-1/sqrt(fan_in), +])."""
    dims = [(n_inputs, 512), (512, 512), (512, 512), (512, 64), (64, 5)]
    params = []
    for (fan_in, fan_out) in dims:
        key, kw, kb = jax.random.split(key, 3)
        bound = 1.0 / jnp.sqrt(fan_in)
        w = jax.random.uniform(kw, (fan_in, fan_out), jnp.float32, -bound, bound)
        bias = jax.random.uniform(kb, (1, fan_out), jnp.float32, -bound, bound)
        params.append((w, bias))
    return params


def dqn_reference_f32(x, params):
    """Pure-JAX f32 reference for the same forward pass."""
    b = x.shape[0]
    t = x.reshape(b, -1).astype(jnp.float32)
    for i, (w, bias) in enumerate(params):
        t = t @ w + bias
        if i < len(params) - 1:
            t = jnp.maximum(t, 0.0)
    return t


def dqn_reference_bf16(x, params):
    """Pure-JAX reference matching the kernel's bf16-in / f32-accumulate /
    bf16-writeback math."""
    b = x.shape[0]
    t = x.reshape(b, -1).astype(jnp.bfloat16)
    for i, (w, bias) in enumerate(params):
        t = jnp.dot(t, w.astype(jnp.bfloat16),
                    preferred_element_type=jnp.float32) + bias
        if i < len(params) - 1:
            t = jnp.maximum(t, 0.0).astype(jnp.bfloat16)
    return t.astype(jnp.bfloat16).astype(jnp.float32)


if __name__ == "__main__":
    key = jax.random.PRNGKey(0)
    k_params, k_x, k_x2 = jax.random.split(key, 3)

    # Small, module-consistent shapes: the DQN flattens its input, so feed a
    # (batch=8, n_inputs=64) observation batch.
    batch, n_inputs = 8, 64
    params = init_params(k_params, n_inputs)

    # One-time weight prep (hoisted out of the forward path).
    prepared = prepare_params(params)
    prepared = jax.block_until_ready(prepared)

    fwd = jax.jit(dqn_forward)

    x = jax.random.normal(k_x, (batch, n_inputs), jnp.float32)
    out = jax.block_until_ready(fwd(x, prepared))
    assert out.shape == (batch, 5), out.shape

    # Tight check against a bf16-matmul / f32-accumulate / bf16-out reference.
    ref_bf16 = dqn_reference_bf16(x, params)
    assert jnp.allclose(out, ref_bf16, atol=2e-2, rtol=2e-2), (
        float(jnp.max(jnp.abs(out - ref_bf16))))

    # Loose sanity check against the full-precision reference.
    ref_f32 = dqn_reference_f32(x, params)
    assert jnp.allclose(out, ref_f32, atol=1e-1, rtol=1e-1), (
        float(jnp.max(jnp.abs(out - ref_f32))))

    # Exercise the multi-tile path (grid of 2, padded batch rows).
    batch2 = 200
    x2 = jax.random.normal(k_x2, (batch2, n_inputs), jnp.float32)
    out2 = jax.block_until_ready(fwd(x2, prepared))
    assert out2.shape == (batch2, 5), out2.shape
    ref2 = dqn_reference_bf16(x2, params)
    assert jnp.allclose(out2, ref2, atol=2e-2, rtol=2e-2), (
        float(jnp.max(jnp.abs(out2 - ref2))))

    print("KERNEL_OK")
</pallas_src>

<mosaic_0001>
module attributes {stable_mosaic.version = 11 : i64} {
  func.func @_dqn_kernel(%arg0: i32, %arg1: memref<16x64xbf16, #tpu.memory_space<vmem>>, %arg2: memref<64x512xbf16, #tpu.memory_space<vmem>>, %arg3: memref<1x512xf32, #tpu.memory_space<vmem>>, %arg4: memref<512x512xbf16, #tpu.memory_space<vmem>>, %arg5: memref<1x512xf32, #tpu.memory_space<vmem>>, %arg6: memref<512x512xbf16, #tpu.memory_space<vmem>>, %arg7: memref<1x512xf32, #tpu.memory_space<vmem>>, %arg8: memref<512x128xbf16, #tpu.memory_space<vmem>>, %arg9: memref<1x128xf32, #tpu.memory_space<vmem>>, %arg10: memref<128x128xbf16, #tpu.memory_space<vmem>>, %arg11: memref<1x128xf32, #tpu.memory_space<vmem>>, %arg12: memref<16x128xbf16, #tpu.memory_space<vmem>>) attributes {dimension_semantics = [#tpu.dimension_semantics<parallel>], iteration_bounds = array<i64: 1>, scalar_prefetch = 0 : i64, scratch_operands = 0 : i64, tpu.core_type = #tpu.core_type<tc>, window_params = [{transform_indices = @transform_0, window_bounds = array<i64: 16, 64>}, {pipeline_mode = #tpu.pipeline_mode<synchronous>, transform_indices = @transform_1, window_bounds = array<i64: 64, 512>}, {pipeline_mode = #tpu.pipeline_mode<synchronous>, transform_indices = @transform_2, window_bounds = array<i64: 1, 512>}, {pipeline_mode = #tpu.pipeline_mode<synchronous>, transform_indices = @transform_3, window_bounds = array<i64: 512, 512>}, {pipeline_mode = #tpu.pipeline_mode<synchronous>, transform_indices = @transform_4, window_bounds = array<i64: 1, 512>}, {pipeline_mode = #tpu.pipeline_mode<synchronous>, transform_indices = @transform_5, window_bounds = array<i64: 512, 512>}, {pipeline_mode = #tpu.pipeline_mode<synchronous>, transform_indices = @transform_6, window_bounds = array<i64: 1, 512>}, {pipeline_mode = #tpu.pipeline_mode<synchronous>, transform_indices = @transform_7, window_bounds = array<i64: 512, 128>}, {pipeline_mode = #tpu.pipeline_mode<synchronous>, transform_indices = @transform_8, window_bounds = array<i64: 1, 128>}, {pipeline_mode = #tpu.pipeline_mode<synchronous>, transform_indices = @transform_9, window_bounds = array<i64: 128, 128>}, {pipeline_mode = #tpu.pipeline_mode<synchronous>, transform_indices = @transform_10, window_bounds = array<i64: 1, 128>}, {transform_indices = @transform_11, window_bounds = array<i64: 16, 128>}]} {
    %c0 = arith.constant 0 : index
    %c0_0 = arith.constant 0 : index
    %0 = vector.load %arg1[%c0, %c0_0] : memref<16x64xbf16, #tpu.memory_space<vmem>>, vector<16x64xbf16>
    %c0_1 = arith.constant 0 : index
    %c0_2 = arith.constant 0 : index
    %1 = vector.load %arg2[%c0_1, %c0_2] : memref<64x512xbf16, #tpu.memory_space<vmem>>, vector<64x512xbf16>
    %cst = arith.constant dense<0.000000e+00> : vector<16x512xf32>
    %2 = tpu.matmul %0, %1, %cst {dimension_numbers = #tpu.dot_dimension_numbers<[1], [0], [0], [1], [0, 0, 1, 1], [], []>} : vector<16x64xbf16>, vector<64x512xbf16>, vector<16x512xf32> -> vector<16x512xf32>
    %c0_3 = arith.constant 0 : index
    %c0_4 = arith.constant 0 : index
    %3 = vector.load %arg3[%c0_3, %c0_4] : memref<1x512xf32, #tpu.memory_space<vmem>>, vector<1x512xf32>
    %4 = vector.broadcast %3 : vector<1x512xf32> to vector<16x512xf32>
    %5 = arith.addf %2, %4 : vector<16x512xf32>
    %cst_5 = arith.constant 0.000000e+00 : f32
    %6 = vector.broadcast %cst_5 : f32 to vector<16x512xf32>
    %7 = arith.maximumf %5, %6 : vector<16x512xf32>
    %8 = arith.truncf %7 : vector<16x512xf32> to vector<16x512xbf16>
    %c0_6 = arith.constant 0 : index
    %c0_7 = arith.constant 0 : index
    %9 = vector.load %arg4[%c0_6, %c0_7] : memref<512x512xbf16, #tpu.memory_space<vmem>>, vector<512x512xbf16>
    %cst_8 = arith.constant dense<0.000000e+00> : vector<16x512xf32>
    %10 = tpu.matmul %8, %9, %cst_8 {dimension_numbers = #tpu.dot_dimension_numbers<[1], [0], [0], [1], [0, 0, 1, 1], [], []>} : vector<16x512xbf16>, vector<512x512xbf16>, vector<16x512xf32> -> vector<16x512xf32>
    %c0_9 = arith.constant 0 : index
    %c0_10 = arith.constant 0 : index
    %11 = vector.load %arg5[%c0_9, %c0_10] : memref<1x512xf32, #tpu.memory_space<vmem>>, vector<1x512xf32>
    %12 = vector.broadcast %11 : vector<1x512xf32> to vector<16x512xf32>
    %13 = arith.addf %10, %12 : vector<16x512xf32>
    %cst_11 = arith.constant 0.000000e+00 : f32
    %14 = vector.broadcast %cst_11 : f32 to vector<16x512xf32>
    %15 = arith.maximumf %13, %14 : vector<16x512xf32>
    %16 = arith.truncf %15 : vector<16x512xf32> to vector<16x512xbf16>
    %c0_12 = arith.constant 0 : index
    %c0_13 = arith.constant 0 : index
    %17 = vector.load %arg6[%c0_12, %c0_13] : memref<512x512xbf16, #tpu.memory_space<vmem>>, vector<512x512xbf16>
    %cst_14 = arith.constant dense<0.000000e+00> : vector<16x512xf32>
    %18 = tpu.matmul %16, %17, %cst_14 {dimension_numbers = #tpu.dot_dimension_numbers<[1], [0], [0], [1], [0, 0, 1, 1], [], []>} : vector<16x512xbf16>, vector<512x512xbf16>, vector<16x512xf32> -> vector<16x512xf32>
    %c0_15 = arith.constant 0 : index
    %c0_16 = arith.constant 0 : index
    %19 = vector.load %arg7[%c0_15, %c0_16] : memref<1x512xf32, #tpu.memory_space<vmem>>, vector<1x512xf32>
    %20 = vector.broadcast %19 : vector<1x512xf32> to vector<16x512xf32>
    %21 = arith.addf %18, %20 : vector<16x512xf32>
    %cst_17 = arith.constant 0.000000e+00 : f32
    %22 = vector.broadcast %cst_17 : f32 to vector<16x512xf32>
    %23 = arith.maximumf %21, %22 : vector<16x512xf32>
    %24 = arith.truncf %23 : vector<16x512xf32> to vector<16x512xbf16>
    %c0_18 = arith.constant 0 : index
    %c0_19 = arith.constant 0 : index
    %25 = vector.load %arg8[%c0_18, %c0_19] : memref<512x128xbf16, #tpu.memory_space<vmem>>, vector<512x128xbf16>
    %cst_20 = arith.constant dense<0.000000e+00> : vector<16x128xf32>
    %26 = tpu.matmul %24, %25, %cst_20 {dimension_numbers = #tpu.dot_dimension_numbers<[1], [0], [0], [1], [0, 0, 1, 1], [], []>} : vector<16x512xbf16>, vector<512x128xbf16>, vector<16x128xf32> -> vector<16x128xf32>
    %c0_21 = arith.constant 0 : index
    %c0_22 = arith.constant 0 : index
    %27 = vector.load %arg9[%c0_21, %c0_22] : memref<1x128xf32, #tpu.memory_space<vmem>>, vector<1x128xf32>
    %28 = vector.broadcast %27 : vector<1x128xf32> to vector<16x128xf32>
    %29 = arith.addf %26, %28 : vector<16x128xf32>
    %cst_23 = arith.constant 0.000000e+00 : f32
    %30 = vector.broadcast %cst_23 : f32 to vector<16x128xf32>
    %31 = arith.maximumf %29, %30 : vector<16x128xf32>
    %32 = arith.truncf %31 : vector<16x128xf32> to vector<16x128xbf16>
    %c0_24 = arith.constant 0 : index
    %c0_25 = arith.constant 0 : index
    %33 = vector.load %arg10[%c0_24, %c0_25] : memref<128x128xbf16, #tpu.memory_space<vmem>>, vector<128x128xbf16>
    %cst_26 = arith.constant dense<0.000000e+00> : vector<16x128xf32>
    %34 = tpu.matmul %32, %33, %cst_26 {dimension_numbers = #tpu.dot_dimension_numbers<[1], [0], [0], [1], [0, 0, 1, 1], [], []>} : vector<16x128xbf16>, vector<128x128xbf16>, vector<16x128xf32> -> vector<16x128xf32>
    %c0_27 = arith.constant 0 : index
    %c0_28 = arith.constant 0 : index
    %35 = vector.load %arg11[%c0_27, %c0_28] : memref<1x128xf32, #tpu.memory_space<vmem>>, vector<1x128xf32>
    %36 = vector.broadcast %35 : vector<1x128xf32> to vector<16x128xf32>
    %37 = arith.addf %34, %36 : vector<16x128xf32>
    %38 = arith.truncf %37 : vector<16x128xf32> to vector<16x128xbf16>
    %c0_29 = arith.constant 0 : index
    %c0_30 = arith.constant 0 : index
    %39 = vector.load %arg12[%c0_29, %c0_30] : memref<16x128xbf16, #tpu.memory_space<vmem>>, vector<16x128xbf16>
    tpu.vector_store %arg12[%c0_29, %c0_30], %38 {strides = array<i32>} : memref<16x128xbf16, #tpu.memory_space<vmem>>, vector<16x128xbf16>,
    return
  }
  func.func @transform_0(%arg0: i32) -> (i32, i32) {
    %c0_i32 = arith.constant 0 : i32
    %c0_i32_0 = arith.constant 0 : i32
    return %arg0, %c0_i32 : i32, i32
  }
  func.func @transform_1(%arg0: i32) -> (i32, i32) {
    %c0_i32 = arith.constant 0 : i32
    %c0_i32_0 = arith.constant 0 : i32
    %c0_i32_1 = arith.constant 0 : i32
    return %c0_i32, %c0_i32_0 : i32, i32
  }
  func.func @transform_2(%arg0: i32) -> (i32, i32) {
    %c0_i32 = arith.constant 0 : i32
    %c0_i32_0 = arith.constant 0 : i32
    %c0_i32_1 = arith.constant 0 : i32
    return %c0_i32, %c0_i32_0 : i32, i32
  }
  func.func @transform_3(%arg0: i32) -> (i32, i32) {
    %c0_i32 = arith.constant 0 : i32
    %c0_i32_0 = arith.constant 0 : i32
    %c0_i32_1 = arith.constant 0 : i32
    return %c0_i32, %c0_i32_0 : i32, i32
  }
  func.func @transform_4(%arg0: i32) -> (i32, i32) {
    %c0_i32 = arith.constant 0 : i32
    %c0_i32_0 = arith.constant 0 : i32
    %c0_i32_1 = arith.constant 0 : i32
    return %c0_i32, %c0_i32_0 : i32, i32
  }
  func.func @transform_5(%arg0: i32) -> (i32, i32) {
    %c0_i32 = arith.constant 0 : i32
    %c0_i32_0 = arith.constant 0 : i32
    %c0_i32_1 = arith.constant 0 : i32
    return %c0_i32, %c0_i32_0 : i32, i32
  }
  func.func @transform_6(%arg0: i32) -> (i32, i32) {
    %c0_i32 = arith.constant 0 : i32
    %c0_i32_0 = arith.constant 0 : i32
    %c0_i32_1 = arith.constant 0 : i32
    return %c0_i32, %c0_i32_0 : i32, i32
  }
  func.func @transform_7(%arg0: i32) -> (i32, i32) {
    %c0_i32 = arith.constant 0 : i32
    %c0_i32_0 = arith.constant 0 : i32
    %c0_i32_1 = arith.constant 0 : i32
    return %c0_i32, %c0_i32_0 : i32, i32
  }
  func.func @transform_8(%arg0: i32) -> (i32, i32) {
    %c0_i32 = arith.constant 0 : i32
    %c0_i32_0 = arith.constant 0 : i32
    %c0_i32_1 = arith.constant 0 : i32
    return %c0_i32, %c0_i32_0 : i32, i32
  }
  func.func @transform_9(%arg0: i32) -> (i32, i32) {
    %c0_i32 = arith.constant 0 : i32
    %c0_i32_0 = arith.constant 0 : i32
    %c0_i32_1 = arith.constant 0 : i32
    return %c0_i32, %c0_i32_0 : i32, i32
  }
  func.func @transform_10(%arg0: i32) -> (i32, i32) {
    %c0_i32 = arith.constant 0 : i32
    %c0_i32_0 = arith.constant 0 : i32
    %c0_i32_1 = arith.constant 0 : i32
    return %c0_i32, %c0_i32_0 : i32, i32
  }
  func.func @transform_11(%arg0: i32) -> (i32, i32) {
    %c0_i32 = arith.constant 0 : i32
    %c0_i32_0 = arith.constant 0 : i32
    return %arg0, %c0_i32 : i32, i32
  }
}

</mosaic_0001>

<llo_original>
// kernel: dqn_forward.1
$region0: #{dqn_forward.1}
  #allocation0 [shape = 'u32[]', space=smem, size = 0x4, offset = 0x4, fixed_abs, tag = 'smem constant byte address 0x4 - core index']
  #allocation1 [shape = 'u32[144,128]{1,0:T(1,128)}', space=vmem, size = 0x12000, scoped, tag = 'internal scratch']
  %s0 = inlined_call_operand.vmem [shape: bf16[16,64], index: 0, kind: input, shape index: {}]
  %s1 = inlined_call_operand.hbm [shape: bf16[64,512], index: 1, kind: input, shape index: {}]
  %s2 = inlined_call_operand.vmem [shape: f32[1,512], index: 2, kind: input, shape index: {}]
  %s3 = inlined_call_operand.hbm [shape: bf16[512,512], index: 3, kind: input, shape index: {}]
  %s4 = inlined_call_operand.vmem [shape: f32[1,512], index: 4, kind: input, shape index: {}]
  %s5 = inlined_call_operand.hbm [shape: bf16[512,512], index: 5, kind: input, shape index: {}]
  %s6 = inlined_call_operand.vmem [shape: f32[1,512], index: 6, kind: input, shape index: {}]
  %s7 = inlined_call_operand.hbm [shape: bf16[512,128], index: 7, kind: input, shape index: {}]
  %s8 = inlined_call_operand.vmem [shape: f32[1,128], index: 8, kind: input, shape index: {}]
  %s9 = inlined_call_operand.hbm [shape: bf16[128,128], index: 9, kind: input, shape index: {}]
  %s10 = inlined_call_operand.vmem [shape: f32[1,128], index: 10, kind: input, shape index: {}]
  %s11 = inlined_call_operand.vmem [shape: bf16[16,128], index: 11, kind: output, shape index: {}]
  %s12 = sld [smem:[#allocation0]]
  $region74: #{dqn_forward.1} parent=0
    _
  %s14 = ssub.s32 1, %s12
  %s15 = scalar_select 0, %s14, %s12
  $region1: #{dqn_forward.1} parent=0
    #allocation2 [shape = 'u8[65536]{0}', space=vmem, size = 0x10000, scoped, tag = 'input window, operand 1, single buffered']
    #allocation3 [shape = 's32[1]{0}', space=sflag, size = 0x4, scoped, tag = 'scoped memory for dqn_forward.1']
    #allocation4 [shape = 'u8[524288]{0}', space=vmem, size = 0x80000, scoped, tag = 'input window, operand 3, single buffered']
    #allocation5 [shape = 's32[1]{0}', space=sflag, size = 0x4, scoped, tag = 'scoped memory for dqn_forward.1']
    #allocation6 [shape = 'u8[524288]{0}', space=vmem, size = 0x80000, scoped, tag = 'input window, operand 5, single buffered']
    #allocation7 [shape = 'u8[131072]{0}', space=vmem, size = 0x20000, scoped, tag = 'input window, operand 7, single buffered']
    #allocation8 [shape = 's32[1]{0}', space=sflag, size = 0x4, scoped, tag = 'scoped memory for dqn_forward.1']
    #allocation9 [shape = 'u8[32768]{0}', space=vmem, size = 0x8000, scoped, tag = 'input window, operand 9, single buffered']
    %16 = vsyncpa [#allocation3], 0
    %17 = vsyncpa [#allocation5], 0
    %18 = vsyncpa [#allocation8], 0
    // Predicated region
    $region2: #{dqn_forward.1} parent=1 // pred_check
      _
    $region3: #{dqn_forward.1} parent=1 // pred_check_branch
      %20 = sbr.rel (0) target = $region5
    $region4: #{dqn_forward.1} parent=1 // pred_region
      _
    $region5: #{dqn_forward.1} parent=1 // pred_fallthru
      _
    // Predicated region
    $region6: #{dqn_forward.1} parent=1 // pred_check
      _
    $region7: #{dqn_forward.1} parent=1 // pred_check_branch
      %22 = sbr.rel (0) target = $region9
    $region8: #{dqn_forward.1} parent=1 // pred_region
      %s24 = ssub.s32 2048, 2048
      %25 = vsyncadd [#allocation3], %s24
      %s26 = sshll.u32 [#allocation2], 4
      %s27 = int_to_ptr.vmem [resolvable:$true] %s26
      %32 = dma.hbm_to_vmem [thread:$0]  %s1, 2048, %s27, [#allocation3], 256, 256, 16
    $region9: #{dqn_forward.1} parent=1 // pred_fallthru
      _
    // Predicated region
    $region10: #{dqn_forward.1} parent=1 // pred_check
      _
    $region11: #{dqn_forward.1} parent=1 // pred_check_branch
      %34 = sbr.rel (0) target = $region13
    $region12: #{dqn_forward.1} parent=1 // pred_region
      _
    $region13: #{dqn_forward.1} parent=1 // pred_fallthru
      _
    // Predicated region
    $region14: #{dqn_forward.1} parent=1 // pred_check
      _
    $region15: #{dqn_forward.1} parent=1 // pred_check_branch
      %36 = sbr.rel (0) target = $region17
    $region16: #{dqn_forward.1} parent=1 // pred_region
      %s38 = ssub.s32 16384, 16384
      %39 = vsyncadd [#allocation5], %s38
      %s40 = sshll.u32 [#allocation4], 4
      %s41 = int_to_ptr.vmem [resolvable:$true] %s40
      %46 = dma.hbm_to_vmem [thread:$0]  %s3, 16384, %s41, [#allocation5], 256, 256, 16
    $region17: #{dqn_forward.1} parent=1 // pred_fallthru
      _
    // Predicated region
    $region18: #{dqn_forward.1} parent=1 // pred_check
      _
    $region19: #{dqn_forward.1} parent=1 // pred_check_branch
      %48 = sbr.rel (0) target = $region21
    $region20: #{dqn_forward.1} parent=1 // pred_region
      _
    $region21: #{dqn_forward.1} parent=1 // pred_fallthru
      _
    // Predicated region
    $region22: #{dqn_forward.1} parent=1 // pred_check
      _
    $region23: #{dqn_forward.1} parent=1 // pred_check_branch
      %50 = sbr.rel (0) target = $region25
    $region24: #{dqn_forward.1} parent=1 // pred_region
      %s52 = ssub.s32 16384, 16384
      %53 = vsyncadd [#allocation5], %s52
      %s54 = sshll.u32 [#allocation6], 4
      %s55 = int_to_ptr.vmem [resolvable:$true] %s54
      %60 = dma.hbm_to_vmem [thread:$0]  %s5, 16384, %s55, [#allocation5], 256, 256, 16
    $region25: #{dqn_forward.1} parent=1 // pred_fallthru
      _
    // Predicated region
    $region26: #{dqn_forward.1} parent=1 // pred_check
      _
    $region27: #{dqn_forward.1} parent=1 // pred_check_branch
      %62 = sbr.rel (0) target = $region29
    $region28: #{dqn_forward.1} parent=1 // pred_region
      _
    $region29: #{dqn_forward.1} parent=1 // pred_fallthru
      _
    // Predicated region
    $region30: #{dqn_forward.1} parent=1 // pred_check
      _
    $region31: #{dqn_forward.1} parent=1 // pred_check_branch
      %64 = sbr.rel (0) target = $region33
    $region32: #{dqn_forward.1} parent=1 // pred_region
      %s66 = ssub.s32 4096, 4096
      %67 = vsyncadd [#allocation8], %s66
      %s68 = sshll.u32 [#allocation7], 4
      %s69 = int_to_ptr.vmem [resolvable:$true] %s68
      %74 = dma.hbm_to_vmem [thread:$0]  %s7, 4096, %s69, [#allocation8], 64, 64, 4
    $region33: #{dqn_forward.1} parent=1 // pred_fallthru
      _
    // Predicated region
    $region34: #{dqn_forward.1} parent=1 // pred_check
      _
    $region35: #{dqn_forward.1} parent=1 // pred_check_branch
      %76 = sbr.rel (0) target = $region37
    $region36: #{dqn_forward.1} parent=1 // pred_region
      _
    $region37: #{dqn_forward.1} parent=1 // pred_fallthru
      _
    // Predicated region
    $region38: #{dqn_forward.1} parent=1 // pred_check
      _
    $region39: #{dqn_forward.1} parent=1 // pred_check_branch
      %78 = sbr.rel (0) target = $region41
    $region40: #{dqn_forward.1} parent=1 // pred_region
      %s80 = ssub.s32 1024, 1024
      %81 = vsyncadd [#allocation8], %s80
      %s82 = sshll.u32 [#allocation9], 4
      %s83 = int_to_ptr.vmem [resolvable:$true] %s82
      %88 = dma.hbm_to_vmem [thread:$0]  %s9, 1024, %s83, [#allocation8], 64, 64, 4
    $region41: #{dqn_forward.1} parent=1 // pred_fallthru
      _
    // Predicated region
    $region42: #{dqn_forward.1} parent=1 // pred_check
      _
    $region43: #{dqn_forward.1} parent=1 // pred_check_branch
      %90 = sbr.rel (0) target = $region45
    $region44: #{dqn_forward.1} parent=1 // pred_region
      _
    $region45: #{dqn_forward.1} parent=1 // pred_fallthru
      _
    // Predicated region
    $region46: #{dqn_forward.1} parent=1 // pred_check
      _
    $region47: #{dqn_forward.1} parent=1 // pred_check_branch
      %92 = sbr.rel (0) target = $region49
    $region48: #{dqn_forward.1} parent=1 // pred_region
      %93 = dma.done [#allocation3], 2048
    $region49: #{dqn_forward.1} parent=1 // pred_fallthru
      _
    // Predicated region
    $region50: #{dqn_forward.1} parent=1 // pred_check
      _
    $region51: #{dqn_forward.1} parent=1 // pred_check_branch
      %95 = sbr.rel (0) target = $region53
    $region52: #{dqn_forward.1} parent=1 // pred_region
      %96 = dma.done [#allocation5], 16384
    $region53: #{dqn_forward.1} parent=1 // pred_fallthru
      _
    // Predicated region
    $region54: #{dqn_forward.1} parent=1 // pred_check
      _
    $region55: #{dqn_forward.1} parent=1 // pred_check_branch
      %98 = sbr.rel (0) target = $region57
    $region56: #{dqn_forward.1} parent=1 // pred_region
      %99 = dma.done [#allocation5], 16384
    $region57: #{dqn_forward.1} parent=1 // pred_fallthru
      _
    // Predicated region
    $region58: #{dqn_forward.1} parent=1 // pred_check
      _
    $region59: #{dqn_forward.1} parent=1 // pred_check_branch
      %101 = sbr.rel (0) target = $region61
    $region60: #{dqn_forward.1} parent=1 // pred_region
      %102 = dma.done [#allocation8], 4096
    $region61: #{dqn_forward.1} parent=1 // pred_fallthru
      _
    // Predicated region
    $region62: #{dqn_forward.1} parent=1 // pred_check
      _
    $region63: #{dqn_forward.1} parent=1 // pred_check_branch
      %104 = sbr.rel (0) target = $region65
    $region64: #{dqn_forward.1} parent=1 // pred_region
      %105 = dma.done [#allocation8], 1024
    $region65: #{dqn_forward.1} parent=1 // pred_fallthru
      _
    %v107 = vld [vmem:[%s0] sm:$0xf]
    %v108 = vld [vmem:[%s0 + $0x4] sm:$0xf]
    %v109 = vld [vmem:[#allocation2] sm:$0xff]
    %v110 = vld [vmem:[#allocation2 + $0x8] sm:$0xff]
    %v111 = vld [vmem:[#allocation2 + $0x10] sm:$0xff]
    %v112 = vld [vmem:[#allocation2 + $0x18] sm:$0xff]
    %v113 = vld [vmem:[#allocation2 + $0x20] sm:$0xff]
    %v114 = vld [vmem:[#allocation2 + $0x28] sm:$0xff]
    %v115 = vld [vmem:[#allocation2 + $0x30] sm:$0xff]
    %v116 = vld [vmem:[#allocation2 + $0x38] sm:$0xff]
    %v117 = vld [vmem:[#allocation2 + $0x40] sm:$0xff]
    %v118 = vld [vmem:[#allocation2 + $0x48] sm:$0xff]
    %v119 = vld [vmem:[#allocation2 + $0x50] sm:$0xff]
    %v120 = vld [vmem:[#allocation2 + $0x58] sm:$0xff]
    %v121 = vld [vmem:[#allocation2 + $0x60] sm:$0xff]
    %v122 = vld [vmem:[#allocation2 + $0x68] sm:$0xff]
    %v123 = vld [vmem:[#allocation2 + $0x70] sm:$0xff]
    %v124 = vld [vmem:[#allocation2 + $0x78] sm:$0xff]
    %v125 = vld [vmem:[%s2] sm:$0xf]
    %v127 = vlaneseq
    %v128 = vshrl.u32 %v127, 7
    %v129 = vsub.s32 0, %v128
    %v130 = vrot.slane %v125, %v129
    %v131 = vlaneseq
    %v132 = vshrl.u32 %v131, 7
    %v133 = vsub.s32 1, %v132
    %v134 = vrot.slane %v125, %v133
    %v135 = vlaneseq
    %v136 = vshrl.u32 %v135, 7
    %v137 = vsub.s32 2, %v136
    %v138 = vrot.slane %v125, %v137
    %v139 = vlaneseq
    %v140 = vshrl.u32 %v139, 7
    %v141 = vsub.s32 3, %v140
    %v142 = vrot.slane %v125, %v141
    %v149 = vunpack.c.l.b16 %v107
    %v150 = vunpack.c.l.b16 %v108
    %v151 = vpack.c.b16 %v150, %v149
    %v168 = vunpack.c.l.b16 %v109
    %v169 = vunpack.c.h.b16 %v109
    %v170 = vunpack.c.l.b16 %v110
    %v171 = vunpack.c.h.b16 %v110
    %v172 = vunpack.c.l.b16 %v111
    %v173 = vunpack.c.h.b16 %v111
    %v174 = vunpack.c.l.b16 %v112
    %v175 = vunpack.c.h.b16 %v112
    %v176 = vunpack.c.l.b16 %v113
    %v177 = vunpack.c.h.b16 %v113
    %v178 = vunpack.c.l.b16 %v114
    %v179 = vunpack.c.h.b16 %v114
    %v180 = vunpack.c.l.b16 %v115
    %v181 = vunpack.c.h.b16 %v115
    %v182 = vunpack.c.l.b16 %v116
    %v183 = vunpack.c.h.b16 %v116
    %v184 = vunpack.c.l.b16 %v117
    %v185 = vunpack.c.h.b16 %v117
    %v186 = vunpack.c.l.b16 %v118
    %v187 = vunpack.c.h.b16 %v118
    %v188 = vunpack.c.l.b16 %v119
    %v189 = vunpack.c.h.b16 %v119
    %v190 = vunpack.c.l.b16 %v120
    %v191 = vunpack.c.h.b16 %v120
    %v192 = vunpack.c.l.b16 %v121
    %v193 = vunpack.c.h.b16 %v121
    %v194 = vunpack.c.l.b16 %v122
    %v195 = vunpack.c.h.b16 %v122
    %v196 = vunpack.c.l.b16 %v123
    %v197 = vunpack.c.h.b16 %v123
    %v198 = vunpack.c.l.b16 %v124
    %v199 = vunpack.c.h.b16 %v124
    %v200 = vpack.c.b16 %v172, %v168
    %v201 = vpack.c.b16 %v173, %v169
    %v202 = vpack.c.b16 %v174, %v170
    %v203 = vpack.c.b16 %v175, %v171
    %v204 = vpack.c.b16 %v180, %v176
    %v205 = vpack.c.b16 %v181, %v177
    %v206 = vpack.c.b16 %v182, %v178
    %v207 = vpack.c.b16 %v183, %v179
    %v208 = vpack.c.b16 %v188, %v184
    %v209 = vpack.c.b16 %v189, %v185
    %v210 = vpack.c.b16 %v190, %v186
    %v211 = vpack.c.b16 %v191, %v187
    %v212 = vpack.c.b16 %v196, %v192
    %v213 = vpack.c.b16 %v197, %v193
    %v214 = vpack.c.b16 %v198, %v194
    %v215 = vpack.c.b16 %v199, %v195
    %vm232 = vcmask 523264
    %v234 = vsel %vm232, %v151, 0
    %236 = vmatprep.subr.bf16.mxu0 0
    %237 = vmatpush1.bf16.msra.mxu0 0
    %238 = vmatprep.subr.bf16.mxu0 0
    %239 = vmatpush1.bf16.msra.mxu0 0
    %240 = vmatprep.subr.bf16.mxu0 0
    %241 = vmatpush1.bf16.msra.mxu0 0
    %242 = vmatprep.subr.bf16.mxu0 0
    %243 = vmatpush1.bf16.msra.mxu0 0
    %244 = vmatprep.subr.bf16.mxu0 %v213
    %245 = vmatpush1.bf16.msra.mxu0 %v212
    %246 = vmatprep.subr.bf16.mxu0 %v209
    %247 = vmatpush1.bf16.msra.mxu0 %v208
    %248 = vmatprep.subr.bf16.mxu0 %v205
    %249 = vmatpush1.bf16.msra.mxu0 %v204
    %250 = vmatprep.subr.bf16.mxu0 %v201
    %251 = vmatpush1.bf16.msra.mxu0 %v200
    %252 = vmatprep.subr.bf16.mxu0 0
    %253 = vmatpush2.bf16.msra.mxu0 0
    %254 = vmatprep.subr.bf16.mxu0 0
    %255 = vmatpush2.bf16.msra.mxu0 0
    %256 = vmatprep.subr.bf16.mxu0 0
    %257 = vmatpush2.bf16.msra.mxu0 0
    %258 = vmatprep.subr.bf16.mxu0 0
    %259 = vmatpush2.bf16.msra.mxu0 0
    %260 = vmatprep.subr.bf16.mxu0 0
    %261 = vmatpush2.bf16.msra.mxu0 0
    %262 = vmatprep.subr.bf16.mxu0 0
    %263 = vmatpush2.bf16.msra.mxu0 0
    %264 = vmatprep.subr.bf16.mxu0 0
    %265 = vmatpush2.bf16.msra.mxu0 0
    %266 = vmatprep.subr.bf16.mxu0 0
    %267 = vmatpush2.bf16.msra.mxu0 0
    %268 = vmatprep.mubr.bf16.mxu0 0
    %269 = vmatmul.mubr.bf16.gmra.mxu0 %v234
    %v270 = vpop.f32.mrf.mxu0
    %v271 = vadd.f32 %v130, %v270
    %v272 = vpop.f32.mrf.mxu0
    %v273 = vadd.f32 %v134, %v272
    %v274 = vpop.f32.mrf.mxu0
    %v275 = vadd.f32 %v130, %v274
    %v276 = vpop.f32.mrf.mxu0
    %v277 = vadd.f32 %v134, %v276
    %278 = vdwg.mxu0
    %279 = vmatprep.subr.bf16.mxu0 0
    %280 = vmatpush1.bf16.msra.mxu0 0
    %281 = vmatprep.subr.bf16.mxu0 0
    %282 = vmatpush1.bf16.msra.mxu0 0
    %283 = vmatprep.subr.bf16.mxu0 0
    %284 = vmatpush1.bf16.msra.mxu0 0
    %285 = vmatprep.subr.bf16.mxu0 0
    %286 = vmatpush1.bf16.msra.mxu0 0
    %287 = vmatprep.subr.bf16.mxu0 %v215
    %288 = vmatpush1.bf16.msra.mxu0 %v214
    %289 = vmatprep.subr.bf16.mxu0 %v211
    %290 = vmatpush1.bf16.msra.mxu0 %v210
    %291 = vmatprep.subr.bf16.mxu0 %v207
    %292 = vmatpush1.bf16.msra.mxu0 %v206
    %293 = vmatprep.subr.bf16.mxu0 %v203
    %294 = vmatpush1.bf16.msra.mxu0 %v202
    %295 = vmatprep.subr.bf16.mxu0 0
    %296 = vmatpush2.bf16.msra.mxu0 0
    %297 = vmatprep.subr.bf16.mxu0 0
    %298 = vmatpush2.bf16.msra.mxu0 0
    %299 = vmatprep.subr.bf16.mxu0 0
    %300 = vmatpush2.bf16.msra.mxu0 0
    %301 = vmatprep.subr.bf16.mxu0 0
    %302 = vmatpush2.bf16.msra.mxu0 0
    %303 = vmatprep.subr.bf16.mxu0 0
    %304 = vmatpush2.bf16.msra.mxu0 0
    %305 = vmatprep.subr.bf16.mxu0 0
    %306 = vmatpush2.bf16.msra.mxu0 0
    %307 = vmatprep.subr.bf16.mxu0 0
    %308 = vmatpush2.bf16.msra.mxu0 0
    %309 = vmatprep.subr.bf16.mxu0 0
    %310 = vmatpush2.bf16.msra.mxu0 0
    %311 = vmatprep.mubr.bf16.mxu0 0
    %312 = vmatmul.mubr.bf16.gmra.mxu0 %v234
    %v313 = vpop.f32.mrf.mxu0
    %v314 = vadd.f32 %v138, %v313
    %v315 = vpop.f32.mrf.mxu0
    %v316 = vadd.f32 %v142, %v315
    %v317 = vpop.f32.mrf.mxu0
    %v318 = vadd.f32 %v138, %v317
    %v319 = vpop.f32.mrf.mxu0
    %v320 = vadd.f32 %v142, %v319
    %321 = vdwg.mxu0
    %v322 = vmax.f32 %v271, 0.0
    %v323 = vmax.f32 %v273, 0.0
    %v324 = vmax.f32 %v314, 0.0
    %v325 = vmax.f32 %v316, 0.0
    %v326 = vmax.f32 %v275, 0.0
    %v327 = vmax.f32 %v277, 0.0
    %v328 = vmax.f32 %v318, 0.0
    %v329 = vmax.f32 %v320, 0.0
    %v330 = vpack.c.bf16 %v326, %v322
    %v331 = vpack.c.bf16 %v327, %v323
    %v332 = vpack.c.bf16 %v328, %v324
    %v333 = vpack.c.bf16 %v329, %v325
    %v334 = vld [vmem:[#allocation4] sm:$0xff]
    %v335 = vld [vmem:[#allocation4 + $0x8] sm:$0xff]
    %v336 = vld [vmem:[#allocation4 + $0x10] sm:$0xff]
    %v337 = vld [vmem:[#allocation4 + $0x18] sm:$0xff]
    %v338 = vld [vmem:[#allocation4 + $0x20] sm:$0xff]
    %v339 = vld [vmem:[#allocation4 + $0x28] sm:$0xff]
    %v340 = vld [vmem:[#allocation4 + $0x30] sm:$0xff]
    %v341 = vld [vmem:[#allocation4 + $0x38] sm:$0xff]
    %v342 = vld [vmem:[#allocation4 + $0x40] sm:$0xff]
    %v343 = vld [vmem:[#allocation4 + $0x48] sm:$0xff]
    %v344 = vld [vmem:[#allocation4 + $0x50] sm:$0xff]
    %v345 = vld [vmem:[#allocation4 + $0x58] sm:$0xff]
    %v346 = vld [vmem:[#allocation4 + $0x60] sm:$0xff]
    %v347 = vld [vmem:[#allocation4 + $0x68] sm:$0xff]
    %v348 = vld [vmem:[#allocation4 + $0x70] sm:$0xff]
    %v349 = vld [vmem:[#allocation4 + $0x78] sm:$0xff]
    %v350 = vld [vmem:[#allocation4 + $0x80] sm:$0xff]
    %v351 = vld [vmem:[#allocation4 + $0x88] sm:$0xff]
    %v352 = vld [vmem:[#allocation4 + $0x90] sm:$0xff]
    %v353 = vld [vmem:[#allocation4 + $0x98] sm:$0xff]
    %v354 = vld [vmem:[#allocation4 + $0xa0] sm:$0xff]
    %v355 = vld [vmem:[#allocation4 + $0xa8] sm:$0xff]
    %v356 = vld [vmem:[#allocation4 + $0xb0] sm:$0xff]
    %v357 = vld [vmem:[#allocation4 + $0xb8] sm:$0xff]
    %v358 = vld [vmem:[#allocation4 + $0xc0] sm:$0xff]
    %v359 = vld [vmem:[#allocation4 + $0xc8] sm:$0xff]
    %v360 = vld [vmem:[#allocation4 + $0xd0] sm:$0xff]
    %v361 = vld [vmem:[#allocation4 + $0xd8] sm:$0xff]
    %v362 = vld [vmem:[#allocation4 + $0xe0] sm:$0xff]
    %v363 = vld [vmem:[#allocation4 + $0xe8] sm:$0xff]
    %v364 = vld [vmem:[#allocation4 + $0xf0] sm:$0xff]
    %v365 = vld [vmem:[#allocation4 + $0xf8] sm:$0xff]
    %v366 = vld [vmem:[#allocation4 + $0x100] sm:$0xff]
    %v367 = vld [vmem:[#allocation4 + $0x108] sm:$0xff]
    %v368 = vld [vmem:[#allocation4 + $0x110] sm:$0xff]
    %v369 = vld [vmem:[#allocation4 + $0x118] sm:$0xff]
    %v370 = vld [vmem:[#allocation4 + $0x120] sm:$0xff]
    %v371 = vld [vmem:[#allocation4 + $0x128] sm:$0xff]
    %v372 = vld [vmem:[#allocation4 + $0x130] sm:$0xff]
    %v373 = vld [vmem:[#allocation4 + $0x138] sm:$0xff]
    %v374 = vld [vmem:[#allocation4 + $0x140] sm:$0xff]
    %v375 = vld [vmem:[#allocation4 + $0x148] sm:$0xff]
    %v376 = vld [vmem:[#allocation4 + $0x150] sm:$0xff]
    %v377 = vld [vmem:[#allocation4 + $0x158] sm:$0xff]
    %v378 = vld [vmem:[#allocation4 + $0x160] sm:$0xff]
    %v379 = vld [vmem:[#allocation4 + $0x168] sm:$0xff]
    %v380 = vld [vmem:[#allocation4 + $0x170] sm:$0xff]
    %v381 = vld [vmem:[#allocation4 + $0x178] sm:$0xff]
    %v382 = vld [vmem:[#allocation4 + $0x180] sm:$0xff]
    %v383 = vld [vmem:[#allocation4 + $0x188] sm:$0xff]
    %v384 = vld [vmem:[#allocation4 + $0x190] sm:$0xff]
    %v385 = vld [vmem:[#allocation4 + $0x198] sm:$0xff]
    %v386 = vld [vmem:[#allocation4 + $0x1a0] sm:$0xff]
    %v387 = vld [vmem:[#allocation4 + $0x1a8] sm:$0xff]
    %v388 = vld [vmem:[#allocation4 + $0x1b0] sm:$0xff]
    %v389 = vld [vmem:[#allocation4 + $0x1b8] sm:$0xff]
    %v390 = vld [vmem:[#allocation4 + $0x1c0] sm:$0xff]
    %v391 = vld [vmem:[#allocation4 + $0x1c8] sm:$0xff]
    %v392 = vld [vmem:[#allocation4 + $0x1d0] sm:$0xff]
    %v393 = vld [vmem:[#allocation4 + $0x1d8] sm:$0xff]
    %v394 = vld [vmem:[#allocation4 + $0x1e0] sm:$0xff]
    %v395 = vld [vmem:[#allocation4 + $0x1e8] sm:$0xff]
    %v396 = vld [vmem:[#allocation4 + $0x1f0] sm:$0xff]
    %v397 = vld [vmem:[#allocation4 + $0x1f8] sm:$0xff]
    %v398 = vld [vmem:[#allocation4 + $0x200] sm:$0xff]
    %v399 = vld [vmem:[#allocation4 + $0x208] sm:$0xff]
    %v400 = vld [vmem:[#allocation4 + $0x210] sm:$0xff]
    %v401 = vld [vmem:[#allocation4 + $0x218] sm:$0xff]
    %v402 = vld [vmem:[#allocation4 + $0x220] sm:$0xff]
    %v403 = vld [vmem:[#allocation4 + $0x228] sm:$0xff]
    %v404 = vld [vmem:[#allocation4 + $0x230] sm:$0xff]
    %v405 = vld [vmem:[#allocation4 + $0x238] sm:$0xff]
    %v406 = vld [vmem:[#allocation4 + $0x240] sm:$0xff]
    %v407 = vld [vmem:[#allocation4 + $0x248] sm:$0xff]
    %v408 = vld [vmem:[#allocation4 + $0x250] sm:$0xff]
    %v409 = vld [vmem:[#allocation4 + $0x258] sm:$0xff]
    %v410 = vld [vmem:[#allocation4 + $0x260] sm:$0xff]
    %v411 = vld [vmem:[#allocation4 + $0x268] sm:$0xff]
    %v412 = vld [vmem:[#allocation4 + $0x270] sm:$0xff]
    %v413 = vld [vmem:[#allocation4 + $0x278] sm:$0xff]
    %v414 = vld [vmem:[#allocation4 + $0x280] sm:$0xff]
    %v415 = vld [vmem:[#allocation4 + $0x288] sm:$0xff]
    %v416 = vld [vmem:[#allocation4 + $0x290] sm:$0xff]
    %v417 = vld [vmem:[#allocation4 + $0x298] sm:$0xff]
    %v418 = vld [vmem:[#allocation4 + $0x2a0] sm:$0xff]
    %v419 = vld [vmem:[#allocation4 + $0x2a8] sm:$0xff]
    %v420 = vld [vmem:[#allocation4 + $0x2b0] sm:$0xff]
    %v421 = vld [vmem:[#allocation4 + $0x2b8] sm:$0xff]
    %v422 = vld [vmem:[#allocation4 + $0x2c0] sm:$0xff]
    %v423 = vld [vmem:[#allocation4 + $0x2c8] sm:$0xff]
    %v424 = vld [vmem:[#allocation4 + $0x2d0] sm:$0xff]
    %v425 = vld [vmem:[#allocation4 + $0x2d8] sm:$0xff]
    %v426 = vld [vmem:[#allocation4 + $0x2e0] sm:$0xff]
    %v427 = vld [vmem:[#allocation4 + $0x2e8] sm:$0xff]
    %v428 = vld [vmem:[#allocation4 + $0x2f0] sm:$0xff]
    %v429 = vld [vmem:[#allocation4 + $0x2f8] sm:$0xff]
    %v430 = vld [vmem:[#allocation4 + $0x300] sm:$0xff]
    %v431 = vld [vmem:[#allocation4 + $0x308] sm:$0xff]
    %v432 = vld [vmem:[#allocation4 + $0x310] sm:$0xff]
    %v433 = vld [vmem:[#allocation4 + $0x318] sm:$0xff]
    %v434 = vld [vmem:[#allocation4 + $0x320] sm:$0xff]
    %v435 = vld [vmem:[#allocation4 + $0x328] sm:$0xff]
    %v436 = vld [vmem:[#allocation4 + $0x330] sm:$0xff]
    %v437 = vld [vmem:[#allocation4 + $0x338] sm:$0xff]
    %v438 = vld [vmem:[#allocation4 + $0x340] sm:$0xff]
    %v439 = vld [vmem:[#allocation4 + $0x348] sm:$0xff]
    %v440 = vld [vmem:[#allocation4 + $0x350] sm:$0xff]
    %v441 = vld [vmem:[#allocation4 + $0x358] sm:$0xff]
    %v442 = vld [vmem:[#allocation4 + $0x360] sm:$0xff]
    %v443 = vld [vmem:[#allocation4 + $0x368] sm:$0xff]
    %v444 = vld [vmem:[#allocation4 + $0x370] sm:$0xff]
    %v445 = vld [vmem:[#allocation4 + $0x378] sm:$0xff]
    %v446 = vld [vmem:[#allocation4 + $0x380] sm:$0xff]
    %v447 = vld [vmem:[#allocation4 + $0x388] sm:$0xff]
    %v448 = vld [vmem:[#allocation4 + $0x390] sm:$0xff]
    %v449 = vld [vmem:[#allocation4 + $0x398] sm:$0xff]
    %v450 = vld [vmem:[#allocation4 + $0x3a0] sm:$0xff]
    %v451 = vld [vmem:[#allocation4 + $0x3a8] sm:$0xff]
    %v452 = vld [vmem:[#allocation4 + $0x3b0] sm:$0xff]
    %v453 = vld [vmem:[#allocation4 + $0x3b8] sm:$0xff]
    %v454 = vld [vmem:[#allocation4 + $0x3c0] sm:$0xff]
    %v455 = vld [vmem:[#allocation4 + $0x3c8] sm:$0xff]
    %v456 = vld [vmem:[#allocation4 + $0x3d0] sm:$0xff]
    %v457 = vld [vmem:[#allocation4 + $0x3d8] sm:$0xff]
    %v458 = vld [vmem:[#allocation4 + $0x3e0] sm:$0xff]
    %v459 = vld [vmem:[#allocation4 + $0x3e8] sm:$0xff]
    %v460 = vld [vmem:[#allocation4 + $0x3f0] sm:$0xff]
    %v461 = vld [vmem:[#allocation4 + $0x3f8] sm:$0xff]
    %v462 = vld [vmem:[%s4] sm:$0xf]
    %v464 = vlaneseq
    %v465 = vshrl.u32 %v464, 7
    %v466 = vsub.s32 0, %v465
    %v467 = vrot.slane %v462, %v466
    %v468 = vlaneseq
    %v469 = vshrl.u32 %v468, 7
    %v470 = vsub.s32 1, %v469
    %v471 = vrot.slane %v462, %v470
    %v472 = vlaneseq
    %v473 = vshrl.u32 %v472, 7
    %v474 = vsub.s32 2, %v473
    %v475 = vrot.slane %v462, %v474
    %v476 = vlaneseq
    %v477 = vshrl.u32 %v476, 7
    %v478 = vsub.s32 3, %v477
    %v479 = vrot.slane %v462, %v478
    %v612 = vunpack.c.l.b16 %v334
    %v613 = vunpack.c.h.b16 %v334
    %v614 = vunpack.c.l.b16 %v335
    %v615 = vunpack.c.h.b16 %v335
    %v616 = vunpack.c.l.b16 %v336
    %v617 = vunpack.c.h.b16 %v336
    %v618 = vunpack.c.l.b16 %v337
    %v619 = vunpack.c.h.b16 %v337
    %v620 = vunpack.c.l.b16 %v338
    %v621 = vunpack.c.h.b16 %v338
    %v622 = vunpack.c.l.b16 %v339
    %v623 = vunpack.c.h.b16 %v339
    %v624 = vunpack.c.l.b16 %v340
    %v625 = vunpack.c.h.b16 %v340
    %v626 = vunpack.c.l.b16 %v341
    %v627 = vunpack.c.h.b16 %v341
    %v628 = vunpack.c.l.b16 %v342
    %v629 = vunpack.c.h.b16 %v342
    %v630 = vunpack.c.l.b16 %v343
    %v631 = vunpack.c.h.b16 %v343
    %v632 = vunpack.c.l.b16 %v344
    %v633 = vunpack.c.h.b16 %v344
    %v634 = vunpack.c.l.b16 %v345
    %v635 = vunpack.c.h.b16 %v345
    %v636 = vunpack.c.l.b16 %v346
    %v637 = vunpack.c.h.b16 %v346
    %v638 = vunpack.c.l.b16 %v347
    %v639 = vunpack.c.h.b16 %v347
    %v640 = vunpack.c.l.b16 %v348
    %v641 = vunpack.c.h.b16 %v348
    %v642 = vunpack.c.l.b16 %v349
    %v643 = vunpack.c.h.b16 %v349
    %v644 = vunpack.c.l.b16 %v350
    %v645 = vunpack.c.h.b16 %v350
    %v646 = vunpack.c.l.b16 %v351
    %v647 = vunpack.c.h.b16 %v351
    %v648 = vunpack.c.l.b16 %v352
    %v649 = vunpack.c.h.b16 %v352
    %v650 = vunpack.c.l.b16 %v353
    %v651 = vunpack.c.h.b16 %v353
    %v652 = vunpack.c.l.b16 %v354
    %v653 = vunpack.c.h.b16 %v354
    %v654 = vunpack.c.l.b16 %v355
    %v655 = vunpack.c.h.b16 %v355
    %v656 = vunpack.c.l.b16 %v356
    %v657 = vunpack.c.h.b16 %v356
    %v658 = vunpack.c.l.b16 %v357
    %v659 = vunpack.c.h.b16 %v357
    %v660 = vunpack.c.l.b16 %v358
    %v661 = vunpack.c.h.b16 %v358
    %v662 = vunpack.c.l.b16 %v359
    %v663 = vunpack.c.h.b16 %v359
    %v664 = vunpack.c.l.b16 %v360
    %v665 = vunpack.c.h.b16 %v360
    %v666 = vunpack.c.l.b16 %v361
    %v667 = vunpack.c.h.b16 %v361
    %v668 = vunpack.c.l.b16 %v362
    %v669 = vunpack.c.h.b16 %v362
    %v670 = vunpack.c.l.b16 %v363
    %v671 = vunpack.c.h.b16 %v363
    %v672 = vunpack.c.l.b16 %v364
    %v673 = vunpack.c.h.b16 %v364
    %v674 = vunpack.c.l.b16 %v365
    %v675 = vunpack.c.h.b16 %v365
    %v676 = vunpack.c.l.b16 %v366
    %v677 = vunpack.c.h.b16 %v366
    %v678 = vunpack.c.l.b16 %v367
    %v679 = vunpack.c.h.b16 %v367
    %v680 = vunpack.c.l.b16 %v368
    %v681 = vunpack.c.h.b16 %v368
    %v682 = vunpack.c.l.b16 %v369
    %v683 = vunpack.c.h.b16 %v369
    %v684 = vunpack.c.l.b16 %v370
    %v685 = vunpack.c.h.b16 %v370
    %v686 = vunpack.c.l.b16 %v371
    %v687 = vunpack.c.h.b16 %v371
    %v688 = vunpack.c.l.b16 %v372
    %v689 = vunpack.c.h.b16 %v372
    %v690 = vunpack.c.l.b16 %v373
    %v691 = vunpack.c.h.b16 %v373
    %v692 = vunpack.c.l.b16 %v374
    %v693 = vunpack.c.h.b16 %v374
    %v694 = vunpack.c.l.b16 %v375
    %v695 = vunpack.c.h.b16 %v375
    %v696 = vunpack.c.l.b16 %v376
    %v697 = vunpack.c.h.b16 %v376
    %v698 = vunpack.c.l.b16 %v377
    %v699 = vunpack.c.h.b16 %v377
    %v700 = vunpack.c.l.b16 %v378
    %v701 = vunpack.c.h.b16 %v378
    %v702 = vunpack.c.l.b16 %v379
    %v703 = vunpack.c.h.b16 %v379
    %v704 = vunpack.c.l.b16 %v380
    %v705 = vunpack.c.h.b16 %v380
    %v706 = vunpack.c.l.b16 %v381
    %v707 = vunpack.c.h.b16 %v381
    %v708 = vunpack.c.l.b16 %v382
    %v709 = vunpack.c.h.b16 %v382
    %v710 = vunpack.c.l.b16 %v383
    %v711 = vunpack.c.h.b16 %v383
    %v712 = vunpack.c.l.b16 %v384
    %v713 = vunpack.c.h.b16 %v384
    %v714 = vunpack.c.l.b16 %v385
    %v715 = vunpack.c.h.b16 %v385
    %v716 = vunpack.c.l.b16 %v386
    %v717 = vunpack.c.h.b16 %v386
    %v718 = vunpack.c.l.b16 %v387
    %v719 = vunpack.c.h.b16 %v387
    %v720 = vunpack.c.l.b16 %v388
    %v721 = vunpack.c.h.b16 %v388
    %v722 = vunpack.c.l.b16 %v389
    %v723 = vunpack.c.h.b16 %v389
    %v724 = vunpack.c.l.b16 %v390
    %v725 = vunpack.c.h.b16 %v390
    %v726 = vunpack.c.l.b16 %v391
    %v727 = vunpack.c.h.b16 %v391
    %v728 = vunpack.c.l.b16 %v392
    %v729 = vunpack.c.h.b16 %v392
    %v730 = vunpack.c.l.b16 %v393
    %v731 = vunpack.c.h.b16 %v393
    %v732 = vunpack.c.l.b16 %v394
    %v733 = vunpack.c.h.b16 %v394
    %v734 = vunpack.c.l.b16 %v395
    %v735 = vunpack.c.h.b16 %v395
    %v736 = vunpack.c.l.b16 %v396
    %v737 = vunpack.c.h.b16 %v396
    %v738 = vunpack.c.l.b16 %v397
    %v739 = vunpack.c.h.b16 %v397
    %v740 = vunpack.c.l.b16 %v398
    %v741 = vunpack.c.h.b16 %v398
    %v742 = vunpack.c.l.b16 %v399
    %v743 = vunpack.c.h.b16 %v399
    %v744 = vunpack.c.l.b16 %v400
    %v745 = vunpack.c.h.b16 %v400
    %v746 = vunpack.c.l.b16 %v401
    %v747 = vunpack.c.h.b16 %v401
    %v748 = vunpack.c.l.b16 %v402
    %v749 = vunpack.c.h.b16 %v402
    %v750 = vunpack.c.l.b16 %v403
    %v751 = vunpack.c.h.b16 %v403
    %v752 = vunpack.c.l.b16 %v404
    %v753 = vunpack.c.h.b16 %v404
    %v754 = vunpack.c.l.b16 %v405
    %v755 = vunpack.c.h.b16 %v405
    %v756 = vunpack.c.l.b16 %v406
    %v757 = vunpack.c.h.b16 %v406
    %v758 = vunpack.c.l.b16 %v407
    %v759 = vunpack.c.h.b16 %v407
    %v760 = vunpack.c.l.b16 %v408
    %v761 = vunpack.c.h.b16 %v408
    %v762 = vunpack.c.l.b16 %v409
    %v763 = vunpack.c.h.b16 %v409
    %v764 = vunpack.c.l.b16 %v410
    %v765 = vunpack.c.h.b16 %v410
    %v766 = vunpack.c.l.b16 %v411
    %v767 = vunpack.c.h.b16 %v411
    %v768 = vunpack.c.l.b16 %v412
    %v769 = vunpack.c.h.b16 %v412
    %v770 = vunpack.c.l.b16 %v413
    %v771 = vunpack.c.h.b16 %v413
    %v772 = vunpack.c.l.b16 %v414
    %v773 = vunpack.c.h.b16 %v414
    %v774 = vunpack.c.l.b16 %v415
    %v775 = vunpack.c.h.b16 %v415
    %v776 = vunpack.c.l.b16 %v416
    %v777 = vunpack.c.h.b16 %v416
    %v778 = vunpack.c.l.b16 %v417
    %v779 = vunpack.c.h.b16 %v417
    %v780 = vunpack.c.l.b16 %v418
    %v781 = vunpack.c.h.b16 %v418
    %v782 = vunpack.c.l.b16 %v419
    %v783 = vunpack.c.h.b16 %v419
    %v784 = vunpack.c.l.b16 %v420
    %v785 = vunpack.c.h.b16 %v420
    %v786 = vunpack.c.l.b16 %v421
    %v787 = vunpack.c.h.b16 %v421
    %v788 = vunpack.c.l.b16 %v422
    %v789 = vunpack.c.h.b16 %v422
    %v790 = vunpack.c.l.b16 %v423
    %v791 = vunpack.c.h.b16 %v423
    %v792 = vunpack.c.l.b16 %v424
    %v793 = vunpack.c.h.b16 %v424
    %v794 = vunpack.c.l.b16 %v425
    %v795 = vunpack.c.h.b16 %v425
    %v796 = vunpack.c.l.b16 %v426
    %v797 = vunpack.c.h.b16 %v426
    %v798 = vunpack.c.l.b16 %v427
    %v799 = vunpack.c.h.b16 %v427
    %v800 = vunpack.c.l.b16 %v428
    %v801 = vunpack.c.h.b16 %v428
    %v802 = vunpack.c.l.b16 %v429
    %v803 = vunpack.c.h.b16 %v429
    %v804 = vunpack.c.l.b16 %v430
    %v805 = vunpack.c.h.b16 %v430
    %v806 = vunpack.c.l.b16 %v431
    %v807 = vunpack.c.h.b16 %v431
    %v808 = vunpack.c.l.b16 %v432
    %v809 = vunpack.c.h.b16 %v432
    %v810 = vunpack.c.l.b16 %v433
    %v811 = vunpack.c.h.b16 %v433
    %v812 = vunpack.c.l.b16 %v434
    %v813 = vunpack.c.h.b16 %v434
    %v814 = vunpack.c.l.b16 %v435
    %v815 = vunpack.c.h.b16 %v435
    %v816 = vunpack.c.l.b16 %v436
    %v817 = vunpack.c.h.b16 %v436
    %v818 = vunpack.c.l.b16 %v437
    %v819 = vunpack.c.h.b16 %v437
    %v820 = vunpack.c.l.b16 %v438
    %v821 = vunpack.c.h.b16 %v438
    %v822 = vunpack.c.l.b16 %v439
    %v823 = vunpack.c.h.b16 %v439
    %v824 = vunpack.c.l.b16 %v440
    %v825 = vunpack.c.h.b16 %v440
    %v826 = vunpack.c.l.b16 %v441
    %v827 = vunpack.c.h.b16 %v441
    %v828 = vunpack.c.l.b16 %v442
    %v829 = vunpack.c.h.b16 %v442
    %v830 = vunpack.c.l.b16 %v443
    %v831 = vunpack.c.h.b16 %v443
    %v832 = vunpack.c.l.b16 %v444
    %v833 = vunpack.c.h.b16 %v444
    %v834 = vunpack.c.l.b16 %v445
    %v835 = vunpack.c.h.b16 %v445
    %v836 = vunpack.c.l.b16 %v446
    %v837 = vunpack.c.h.b16 %v446
    %v838 = vunpack.c.l.b16 %v447
    %v839 = vunpack.c.h.b16 %v447
    %v840 = vunpack.c.l.b16 %v448
    %v841 = vunpack.c.h.b16 %v448
    %v842 = vunpack.c.l.b16 %v449
    %v843 = vunpack.c.h.b16 %v449
    %v844 = vunpack.c.l.b16 %v450
    %v845 = vunpack.c.h.b16 %v450
    %v846 = vunpack.c.l.b16 %v451
    %v847 = vunpack.c.h.b16 %v451
    %v848 = vunpack.c.l.b16 %v452
    %v849 = vunpack.c.h.b16 %v452
    %v850 = vunpack.c.l.b16 %v453
    %v851 = vunpack.c.h.b16 %v453
    %v852 = vunpack.c.l.b16 %v454
    %v853 = vunpack.c.h.b16 %v454
    %v854 = vunpack.c.l.b16 %v455
    %v855 = vunpack.c.h.b16 %v455
    %v856 = vunpack.c.l.b16 %v456
    %v857 = vunpack.c.h.b16 %v456
    %v858 = vunpack.c.l.b16 %v457
    %v859 = vunpack.c.h.b16 %v457
    %v860 = vunpack.c.l.b16 %v458
    %v861 = vunpack.c.h.b16 %v458
    %v862 = vunpack.c.l.b16 %v459
    %v863 = vunpack.c.h.b16 %v459
    %v864 = vunpack.c.l.b16 %v460
    %v865 = vunpack.c.h.b16 %v460
    %v866 = vunpack.c.l.b16 %v461
    %v867 = vunpack.c.h.b16 %v461
    %v868 = vpack.c.b16 %v616, %v612
    %v869 = vpack.c.b16 %v617, %v613
    %v870 = vpack.c.b16 %v618, %v614
    %v871 = vpack.c.b16 %v619, %v615
    %v872 = vpack.c.b16 %v624, %v620
    %v873 = vpack.c.b16 %v625, %v621
    %v874 = vpack.c.b16 %v626, %v622
    %v875 = vpack.c.b16 %v627, %v623
    %v876 = vpack.c.b16 %v632, %v628
    %v877 = vpack.c.b16 %v633, %v629
    %v878 = vpack.c.b16 %v634, %v630
    %v879 = vpack.c.b16 %v635, %v631
    %v880 = vpack.c.b16 %v640, %v636
    %v881 = vpack.c.b16 %v641, %v637
    %v882 = vpack.c.b16 %v642, %v638
    %v883 = vpack.c.b16 %v643, %v639
    %v884 = vpack.c.b16 %v648, %v644
    %v885 = vpack.c.b16 %v649, %v645
    %v886 = vpack.c.b16 %v650, %v646
    %v887 = vpack.c.b16 %v651, %v647
    %v888 = vpack.c.b16 %v656, %v652
    %v889 = vpack.c.b16 %v657, %v653
    %v890 = vpack.c.b16 %v658, %v654
    %v891 = vpack.c.b16 %v659, %v655
    %v892 = vpack.c.b16 %v664, %v660
    %v893 = vpack.c.b16 %v665, %v661
    %v894 = vpack.c.b16 %v666, %v662
    %v895 = vpack.c.b16 %v667, %v663
    %v896 = vpack.c.b16 %v672, %v668
    %v897 = vpack.c.b16 %v673, %v669
    %v898 = vpack.c.b16 %v674, %v670
    %v899 = vpack.c.b16 %v675, %v671
    %v900 = vpack.c.b16 %v680, %v676
    %v901 = vpack.c.b16 %v681, %v677
    %v902 = vpack.c.b16 %v682, %v678
    %v903 = vpack.c.b16 %v683, %v679
    %v904 = vpack.c.b16 %v688, %v684
    %v905 = vpack.c.b16 %v689, %v685
    %v906 = vpack.c.b16 %v690, %v686
    %v907 = vpack.c.b16 %v691, %v687
    %v908 = vpack.c.b16 %v696, %v692
    %v909 = vpack.c.b16 %v697, %v693
    %v910 = vpack.c.b16 %v698, %v694
    %v911 = vpack.c.b16 %v699, %v695
    %v912 = vpack.c.b16 %v704, %v700
    %v913 = vpack.c.b16 %v705, %v701
    %v914 = vpack.c.b16 %v706, %v702
    %v915 = vpack.c.b16 %v707, %v703
    %v916 = vpack.c.b16 %v712, %v708
    %v917 = vpack.c.b16 %v713, %v709
    %v918 = vpack.c.b16 %v714, %v710
    %v919 = vpack.c.b16 %v715, %v711
    %v920 = vpack.c.b16 %v720, %v716
    %v921 = vpack.c.b16 %v721, %v717
    %v922 = vpack.c.b16 %v722, %v718
    %v923 = vpack.c.b16 %v723, %v719
    %v924 = vpack.c.b16 %v728, %v724
    %v925 = vpack.c.b16 %v729, %v725
    %v926 = vpack.c.b16 %v730, %v726
    %v927 = vpack.c.b16 %v731, %v727
    %v928 = vpack.c.b16 %v736, %v732
    %v929 = vpack.c.b16 %v737, %v733
    %v930 = vpack.c.b16 %v738, %v734
    %v931 = vpack.c.b16 %v739, %v735
    %v932 = vpack.c.b16 %v744, %v740
    %v933 = vpack.c.b16 %v745, %v741
    %v934 = vpack.c.b16 %v746, %v742
    %v935 = vpack.c.b16 %v747, %v743
    %v936 = vpack.c.b16 %v752, %v748
    %v937 = vpack.c.b16 %v753, %v749
    %v938 = vpack.c.b16 %v754, %v750
    %v939 = vpack.c.b16 %v755, %v751
    %v940 = vpack.c.b16 %v760, %v756
    %v941 = vpack.c.b16 %v761, %v757
    %v942 = vpack.c.b16 %v762, %v758
    %v943 = vpack.c.b16 %v763, %v759
    %v944 = vpack.c.b16 %v768, %v764
    %v945 = vpack.c.b16 %v769, %v765
    %v946 = vpack.c.b16 %v770, %v766
    %v947 = vpack.c.b16 %v771, %v767
    %v948 = vpack.c.b16 %v776, %v772
    %v949 = vpack.c.b16 %v777, %v773
    %v950 = vpack.c.b16 %v778, %v774
    %v951 = vpack.c.b16 %v779, %v775
    %v952 = vpack.c.b16 %v784, %v780
    %v953 = vpack.c.b16 %v785, %v781
    %v954 = vpack.c.b16 %v786, %v782
    %v955 = vpack.c.b16 %v787, %v783
    %v956 = vpack.c.b16 %v792, %v788
    %v957 = vpack.c.b16 %v793, %v789
    %v958 = vpack.c.b16 %v794, %v790
    %v959 = vpack.c.b16 %v795, %v791
    %v960 = vpack.c.b16 %v800, %v796
    %v961 = vpack.c.b16 %v801, %v797
    %v962 = vpack.c.b16 %v802, %v798
    %v963 = vpack.c.b16 %v803, %v799
    %v964 = vpack.c.b16 %v808, %v804
    %v965 = vpack.c.b16 %v809, %v805
    %v966 = vpack.c.b16 %v810, %v806
    %v967 = vpack.c.b16 %v811, %v807
    %v968 = vpack.c.b16 %v816, %v812
    %v969 = vpack.c.b16 %v817, %v813
    %v970 = vpack.c.b16 %v818, %v814
    %v971 = vpack.c.b16 %v819, %v815
    %v972 = vpack.c.b16 %v824, %v820
    %v973 = vpack.c.b16 %v825, %v821
    %v974 = vpack.c.b16 %v826, %v822
    %v975 = vpack.c.b16 %v827, %v823
    %v976 = vpack.c.b16 %v832, %v828
    %v977 = vpack.c.b16 %v833, %v829
    %v978 = vpack.c.b16 %v834, %v830
    %v979 = vpack.c.b16 %v835, %v831
    %v980 = vpack.c.b16 %v840, %v836
    %v981 = vpack.c.b16 %v841, %v837
    %v982 = vpack.c.b16 %v842, %v838
    %v983 = vpack.c.b16 %v843, %v839
    %v984 = vpack.c.b16 %v848, %v844
    %v985 = vpack.c.b16 %v849, %v845
    %v986 = vpack.c.b16 %v850, %v846
    %v987 = vpack.c.b16 %v851, %v847
    %v988 = vpack.c.b16 %v856, %v852
    %v989 = vpack.c.b16 %v857, %v853
    %v990 = vpack.c.b16 %v858, %v854
    %v991 = vpack.c.b16 %v859, %v855
    %v992 = vpack.c.b16 %v864, %v860
    %v993 = vpack.c.b16 %v865, %v861
    %v994 = vpack.c.b16 %v866, %v862
    %v995 = vpack.c.b16 %v867, %v863
    %1124 = vmatprep.subr.bf16.mxu0 %v897
    %1125 = vmatpush1.bf16.msra.mxu0 %v896
    %1126 = vmatprep.subr.bf16.mxu0 %v893
    %1127 = vmatpush1.bf16.msra.mxu0 %v892
    %1128 = vmatprep.subr.bf16.mxu0 %v889
    %1129 = vmatpush1.bf16.msra.mxu0 %v888
    %1130 = vmatprep.subr.bf16.mxu0 %v885
    %1131 = vmatpush1.bf16.msra.mxu0 %v884
    %1132 = vmatprep.subr.bf16.mxu0 %v881
    %1133 = vmatpush1.bf16.msra.mxu0 %v880
    %1134 = vmatprep.subr.bf16.mxu0 %v877
    %1135 = vmatpush1.bf16.msra.mxu0 %v876
    %1136 = vmatprep.subr.bf16.mxu0 %v873
    %1137 = vmatpush1.bf16.msra.mxu0 %v872
    %1138 = vmatprep.subr.bf16.mxu0 %v869
    %1139 = vmatpush1.bf16.msra.mxu0 %v868
    %1140 = vmatprep.subr.bf16.mxu0 %v929
    %1141 = vmatpush2.bf16.msra.mxu0 %v928
    %1142 = vmatprep.subr.bf16.mxu0 %v925
    %1143 = vmatpush2.bf16.msra.mxu0 %v924
    %1144 = vmatprep.subr.bf16.mxu0 %v921
    %1145 = vmatpush2.bf16.msra.mxu0 %v920
    %1146 = vmatprep.subr.bf16.mxu0 %v917
    %1147 = vmatpush2.bf16.msra.mxu0 %v916
    %1148 = vmatprep.subr.bf16.mxu0 %v913
    %1149 = vmatpush2.bf16.msra.mxu0 %v912
    %1150 = vmatprep.subr.bf16.mxu0 %v909
    %1151 = vmatpush2.bf16.msra.mxu0 %v908
    %1152 = vmatprep.subr.bf16.mxu0 %v905
    %1153 = vmatpush2.bf16.msra.mxu0 %v904
    %1154 = vmatprep.subr.bf16.mxu0 %v901
    %1155 = vmatpush2.bf16.msra.mxu0 %v900
    %1156 = vmatprep.mubr.bf16.mxu0 %v331
    %1157 = vmatmul.mubr.bf16.gmra.mxu0 %v330
    %v1158 = vpop.f32.mrf.mxu0
    %v1159 = vadd.f32 %v467, %v1158
    %v1160 = vpop.f32.mrf.mxu0
    %v1161 = vadd.f32 %v471, %v1160
    %v1162 = vpop.f32.mrf.mxu0
    %v1163 = vadd.f32 %v467, %v1162
    %v1164 = vpop.f32.mrf.mxu0
    %v1165 = vadd.f32 %v471, %v1164
    %1166 = vdwg.mxu0
    %1167 = vmatprep.subr.bf16.mxu0 %v961
    %1168 = vmatpush1.bf16.msra.mxu0 %v960
    %1169 = vmatprep.subr.bf16.mxu0 %v957
    %1170 = vmatpush1.bf16.msra.mxu0 %v956
    %1171 = vmatprep.subr.bf16.mxu0 %v953
    %1172 = vmatpush1.bf16.msra.mxu0 %v952
    %1173 = vmatprep.subr.bf16.mxu0 %v949
    %1174 = vmatpush1.bf16.msra.mxu0 %v948
    %1175 = vmatprep.subr.bf16.mxu0 %v945
    %1176 = vmatpush1.bf16.msra.mxu0 %v944
    %1177 = vmatprep.subr.bf16.mxu0 %v941
    %1178 = vmatpush1.bf16.msra.mxu0 %v940
    %1179 = vmatprep.subr.bf16.mxu0 %v937
    %1180 = vmatpush1.bf16.msra.mxu0 %v936
    %1181 = vmatprep.subr.bf16.mxu0 %v933
    %1182 = vmatpush1.bf16.msra.mxu0 %v932
    %1183 = vmatprep.subr.bf16.mxu0 %v993
    %1184 = vmatpush2.bf16.msra.mxu0 %v992
    %1185 = vmatprep.subr.bf16.mxu0 %v989
    %1186 = vmatpush2.bf16.msra.mxu0 %v988
    %1187 = vmatprep.subr.bf16.mxu0 %v985
    %1188 = vmatpush2.bf16.msra.mxu0 %v984
    %1189 = vmatprep.subr.bf16.mxu0 %v981
    %1190 = vmatpush2.bf16.msra.mxu0 %v980
    %1191 = vmatprep.subr.bf16.mxu0 %v977
    %1192 = vmatpush2.bf16.msra.mxu0 %v976
    %1193 = vmatprep.subr.bf16.mxu0 %v973
    %1194 = vmatpush2.bf16.msra.mxu0 %v972
    %1195 = vmatprep.subr.bf16.mxu0 %v969
    %1196 = vmatpush2.bf16.msra.mxu0 %v968
    %1197 = vmatprep.subr.bf16.mxu0 %v965
    %1198 = vmatpush2.bf16.msra.mxu0 %v964
    %1199 = vmatprep.mubr.bf16.mxu0 %v333
    %1200 = vmatmul.mubr.bf16.gmra.mxu0 %v332
    %v1201 = vpop.f32.mrf.mxu0
    %v1202 = vadd.f32 %v1159, %v1201
    %v1203 = vpop.f32.mrf.mxu0
    %v1204 = vadd.f32 %v1161, %v1203
    %v1205 = vpop.f32.mrf.mxu0
    %v1206 = vadd.f32 %v1163, %v1205
    %v1207 = vpop.f32.mrf.mxu0
    %v1208 = vadd.f32 %v1165, %v1207
    %1209 = vdwg.mxu0
    %1210 = vmatprep.subr.bf16.mxu0 %v899
    %1211 = vmatpush1.bf16.msra.mxu0 %v898
    %1212 = vmatprep.subr.bf16.mxu0 %v895
    %1213 = vmatpush1.bf16.msra.mxu0 %v894
    %1214 = vmatprep.subr.bf16.mxu0 %v891
    %1215 = vmatpush1.bf16.msra.mxu0 %v890
    %1216 = vmatprep.subr.bf16.mxu0 %v887
    %1217 = vmatpush1.bf16.msra.mxu0 %v886
    %1218 = vmatprep.subr.bf16.mxu0 %v883
    %1219 = vmatpush1.bf16.msra.mxu0 %v882
    %1220 = vmatprep.subr.bf16.mxu0 %v879
    %1221 = vmatpush1.bf16.msra.mxu0 %v878
    %1222 = vmatprep.subr.bf16.mxu0 %v875
    %1223 = vmatpush1.bf16.msra.mxu0 %v874
    %1224 = vmatprep.subr.bf16.mxu0 %v871
    %1225 = vmatpush1.bf16.msra.mxu0 %v870
    %1226 = vmatprep.subr.bf16.mxu0 %v931
    %1227 = vmatpush2.bf16.msra.mxu0 %v930
    %1228 = vmatprep.subr.bf16.mxu0 %v927
    %1229 = vmatpush2.bf16.msra.mxu0 %v926
    %1230 = vmatprep.subr.bf16.mxu0 %v923
    %1231 = vmatpush2.bf16.msra.mxu0 %v922
    %1232 = vmatprep.subr.bf16.mxu0 %v919
    %1233 = vmatpush2.bf16.msra.mxu0 %v918
    %1234 = vmatprep.subr.bf16.mxu0 %v915
    %1235 = vmatpush2.bf16.msra.mxu0 %v914
    %1236 = vmatprep.subr.bf16.mxu0 %v911
    %1237 = vmatpush2.bf16.msra.mxu0 %v910
    %1238 = vmatprep.subr.bf16.mxu0 %v907
    %1239 = vmatpush2.bf16.msra.mxu0 %v906
    %1240 = vmatprep.subr.bf16.mxu0 %v903
    %1241 = vmatpush2.bf16.msra.mxu0 %v902
    %1242 = vmatprep.mubr.bf16.mxu0 %v331
    %1243 = vmatmul.mubr.bf16.gmra.mxu0 %v330
    %v1244 = vpop.f32.mrf.mxu0
    %v1245 = vadd.f32 %v475, %v1244
    %v1246 = vpop.f32.mrf.mxu0
    %v1247 = vadd.f32 %v479, %v1246
    %v1248 = vpop.f32.mrf.mxu0
    %v1249 = vadd.f32 %v475, %v1248
    %v1250 = vpop.f32.mrf.mxu0
    %v1251 = vadd.f32 %v479, %v1250
    %1252 = vdwg.mxu0
    %1253 = vmatprep.subr.bf16.mxu0 %v963
    %1254 = vmatpush1.bf16.msra.mxu0 %v962
    %1255 = vmatprep.subr.bf16.mxu0 %v959
    %1256 = vmatpush1.bf16.msra.mxu0 %v958
    %1257 = vmatprep.subr.bf16.mxu0 %v955
    %1258 = vmatpush1.bf16.msra.mxu0 %v954
    %1259 = vmatprep.subr.bf16.mxu0 %v951
    %1260 = vmatpush1.bf16.msra.mxu0 %v950
    %1261 = vmatprep.subr.bf16.mxu0 %v947
    %1262 = vmatpush1.bf16.msra.mxu0 %v946
    %1263 = vmatprep.subr.bf16.mxu0 %v943
    %1264 = vmatpush1.bf16.msra.mxu0 %v942
    %1265 = vmatprep.subr.bf16.mxu0 %v939
    %1266 = vmatpush1.bf16.msra.mxu0 %v938
    %1267 = vmatprep.subr.bf16.mxu0 %v935
    %1268 = vmatpush1.bf16.msra.mxu0 %v934
    %1269 = vmatprep.subr.bf16.mxu0 %v995
    %1270 = vmatpush2.bf16.msra.mxu0 %v994
    %1271 = vmatprep.subr.bf16.mxu0 %v991
    %1272 = vmatpush2.bf16.msra.mxu0 %v990
    %1273 = vmatprep.subr.bf16.mxu0 %v987
    %1274 = vmatpush2.bf16.msra.mxu0 %v986
    %1275 = vmatprep.subr.bf16.mxu0 %v983
    %1276 = vmatpush2.bf16.msra.mxu0 %v982
    %1277 = vmatprep.subr.bf16.mxu0 %v979
    %1278 = vmatpush2.bf16.msra.mxu0 %v978
    %1279 = vmatprep.subr.bf16.mxu0 %v975
    %1280 = vmatpush2.bf16.msra.mxu0 %v974
    %1281 = vmatprep.subr.bf16.mxu0 %v971
    %1282 = vmatpush2.bf16.msra.mxu0 %v970
    %1283 = vmatprep.subr.bf16.mxu0 %v967
    %1284 = vmatpush2.bf16.msra.mxu0 %v966
    %1285 = vmatprep.mubr.bf16.mxu0 %v333
    %1286 = vmatmul.mubr.bf16.gmra.mxu0 %v332
    %v1287 = vpop.f32.mrf.mxu0
    %v1288 = vadd.f32 %v1245, %v1287
    %v1289 = vpop.f32.mrf.mxu0
    %v1290 = vadd.f32 %v1247, %v1289
    %v1291 = vpop.f32.mrf.mxu0
    %v1292 = vadd.f32 %v1249, %v1291
    %v1293 = vpop.f32.mrf.mxu0
    %v1294 = vadd.f32 %v1251, %v1293
    %1295 = vdwg.mxu0
    %v1296 = vmax.f32 %v1202, 0.0
    %v1297 = vmax.f32 %v1204, 0.0
    %v1298 = vmax.f32 %v1288, 0.0
    %v1299 = vmax.f32 %v1290, 0.0
    %v1300 = vmax.f32 %v1206, 0.0
    %v1301 = vmax.f32 %v1208, 0.0
    %v1302 = vmax.f32 %v1292, 0.0
    %v1303 = vmax.f32 %v1294, 0.0
    %v1304 = vpack.c.bf16 %v1300, %v1296
    %v1305 = vpack.c.bf16 %v1301, %v1297
    %v1306 = vpack.c.bf16 %v1302, %v1298
    %v1307 = vpack.c.bf16 %v1303, %v1299
    %v1308 = vld [vmem:[#allocation6] sm:$0xff]
    %v1309 = vld [vmem:[#allocation6 + $0x8] sm:$0xff]
    %v1310 = vld [vmem:[#allocation6 + $0x10] sm:$0xff]
    %v1311 = vld [vmem:[#allocation6 + $0x18] sm:$0xff]
    %v1312 = vld [vmem:[#allocation6 + $0x20] sm:$0xff]
    %v1313 = vld [vmem:[#allocation6 + $0x28] sm:$0xff]
    %v1314 = vld [vmem:[#allocation6 + $0x30] sm:$0xff]
    %v1315 = vld [vmem:[#allocation6 + $0x38] sm:$0xff]
    %v1316 = vld [vmem:[#allocation6 + $0x40] sm:$0xff]
    %v1317 = vld [vmem:[#allocation6 + $0x48] sm:$0xff]
    %v1318 = vld [vmem:[#allocation6 + $0x50] sm:$0xff]
    %v1319 = vld [vmem:[#allocation6 + $0x58] sm:$0xff]
    %v1320 = vld [vmem:[#allocation6 + $0x60] sm:$0xff]
    %v1321 = vld [vmem:[#allocation6 + $0x68] sm:$0xff]
    %v1322 = vld [vmem:[#allocation6 + $0x70] sm:$0xff]
    %v1323 = vld [vmem:[#allocation6 + $0x78] sm:$0xff]
    %v1324 = vld [vmem:[#allocation6 + $0x80] sm:$0xff]
    %v1325 = vld [vmem:[#allocation6 + $0x88] sm:$0xff]
    %v1326 = vld [vmem:[#allocation6 + $0x90] sm:$0xff]
    %v1327 = vld [vmem:[#allocation6 + $0x98] sm:$0xff]
    %v1328 = vld [vmem:[#allocation6 + $0xa0] sm:$0xff]
    %v1329 = vld [vmem:[#allocation6 + $0xa8] sm:$0xff]
    %v1330 = vld [vmem:[#allocation6 + $0xb0] sm:$0xff]
    %v1331 = vld [vmem:[#allocation6 + $0xb8] sm:$0xff]
    %v1332 = vld [vmem:[#allocation6 + $0xc0] sm:$0xff]
    %v1333 = vld [vmem:[#allocation6 + $0xc8] sm:$0xff]
    %v1334 = vld [vmem:[#allocation6 + $0xd0] sm:$0xff]
    %v1335 = vld [vmem:[#allocation6 + $0xd8] sm:$0xff]
    %v1336 = vld [vmem:[#allocation6 + $0xe0] sm:$0xff]
    %v1337 = vld [vmem:[#allocation6 + $0xe8] sm:$0xff]
    %v1338 = vld [vmem:[#allocation6 + $0xf0] sm:$0xff]
    %v1339 = vld [vmem:[#allocation6 + $0xf8] sm:$0xff]
    %v1340 = vld [vmem:[#allocation6 + $0x100] sm:$0xff]
    %v1341 = vld [vmem:[#allocation6 + $0x108] sm:$0xff]
    %v1342 = vld [vmem:[#allocation6 + $0x110] sm:$0xff]
    %v1343 = vld [vmem:[#allocation6 + $0x118] sm:$0xff]
    %v1344 = vld [vmem:[#allocation6 + $0x120] sm:$0xff]
    %v1345 = vld [vmem:[#allocation6 + $0x128] sm:$0xff]
    %v1346 = vld [vmem:[#allocation6 + $0x130] sm:$0xff]
    %v1347 = vld [vmem:[#allocation6 + $0x138] sm:$0xff]
    %v1348 = vld [vmem:[#allocation6 + $0x140] sm:$0xff]
    %v1349 = vld [vmem:[#allocation6 + $0x148] sm:$0xff]
    %v1350 = vld [vmem:[#allocation6 + $0x150] sm:$0xff]
    %v1351 = vld [vmem:[#allocation6 + $0x158] sm:$0xff]
    %v1352 = vld [vmem:[#allocation6 + $0x160] sm:$0xff]
    %v1353 = vld [vmem:[#allocation6 + $0x168] sm:$0xff]
    %v1354 = vld [vmem:[#allocation6 + $0x170] sm:$0xff]
    %v1355 = vld [vmem:[#allocation6 + $0x178] sm:$0xff]
    %v1356 = vld [vmem:[#allocation6 + $0x180] sm:$0xff]
    %v1357 = vld [vmem:[#allocation6 + $0x188] sm:$0xff]
    %v1358 = vld [vmem:[#allocation6 + $0x190] sm:$0xff]
    %v1359 = vld [vmem:[#allocation6 + $0x198] sm:$0xff]
    %v1360 = vld [vmem:[#allocation6 + $0x1a0] sm:$0xff]
    %v1361 = vld [vmem:[#allocation6 + $0x1a8] sm:$0xff]
    %v1362 = vld [vmem:[#allocation6 + $0x1b0] sm:$0xff]
    %v1363 = vld [vmem:[#allocation6 + $0x1b8] sm:$0xff]
    %v1364 = vld [vmem:[#allocation6 + $0x1c0] sm:$0xff]
    %v1365 = vld [vmem:[#allocation6 + $0x1c8] sm:$0xff]
    %v1366 = vld [vmem:[#allocation6 + $0x1d0] sm:$0xff]
    %v1367 = vld [vmem:[#allocation6 + $0x1d8] sm:$0xff]
    %v1368 = vld [vmem:[#allocation6 + $0x1e0] sm:$0xff]
    %v1369 = vld [vmem:[#allocation6 + $0x1e8] sm:$0xff]
    %v1370 = vld [vmem:[#allocation6 + $0x1f0] sm:$0xff]
    %v1371 = vld [vmem:[#allocation6 + $0x1f8] sm:$0xff]
    %v1372 = vld [vmem:[#allocation6 + $0x200] sm:$0xff]
    %v1373 = vld [vmem:[#allocation6 + $0x208] sm:$0xff]
    %v1374 = vld [vmem:[#allocation6 + $0x210] sm:$0xff]
    %v1375 = vld [vmem:[#allocation6 + $0x218] sm:$0xff]
    %v1376 = vld [vmem:[#allocation6 + $0x220] sm:$0xff]
    %v1377 = vld [vmem:[#allocation6 + $0x228] sm:$0xff]
    %v1378 = vld [vmem:[#allocation6 + $0x230] sm:$0xff]
    %v1379 = vld [vmem:[#allocation6 + $0x238] sm:$0xff]
    %v1380 = vld [vmem:[#allocation6 + $0x240] sm:$0xff]
    %v1381 = vld [vmem:[#allocation6 + $0x248] sm:$0xff]
    %v1382 = vld [vmem:[#allocation6 + $0x250] sm:$0xff]
    %v1383 = vld [vmem:[#allocation6 + $0x258] sm:$0xff]
    %v1384 = vld [vmem:[#allocation6 + $0x260] sm:$0xff]
    %v1385 = vld [vmem:[#allocation6 + $0x268] sm:$0xff]
    %v1386 = vld [vmem:[#allocation6 + $0x270] sm:$0xff]
    %v1387 = vld [vmem:[#allocation6 + $0x278] sm:$0xff]
    %v1388 = vld [vmem:[#allocation6 + $0x280] sm:$0xff]
    %v1389 = vld [vmem:[#allocation6 + $0x288] sm:$0xff]
    %v1390 = vld [vmem:[#allocation6 + $0x290] sm:$0xff]
    %v1391 = vld [vmem:[#allocation6 + $0x298] sm:$0xff]
    %v1392 = vld [vmem:[#allocation6 + $0x2a0] sm:$0xff]
    %v1393 = vld [vmem:[#allocation6 + $0x2a8] sm:$0xff]
    %v1394 = vld [vmem:[#allocation6 + $0x2b0] sm:$0xff]
    %v1395 = vld [vmem:[#allocation6 + $0x2b8] sm:$0xff]
    %v1396 = vld [vmem:[#allocation6 + $0x2c0] sm:$0xff]
    %v1397 = vld [vmem:[#allocation6 + $0x2c8] sm:$0xff]
    %v1398 = vld [vmem:[#allocation6 + $0x2d0] sm:$0xff]
    %v1399 = vld [vmem:[#allocation6 + $0x2d8] sm:$0xff]
    %v1400 = vld [vmem:[#allocation6 + $0x2e0] sm:$0xff]
    %v1401 = vld [vmem:[#allocation6 + $0x2e8] sm:$0xff]
    %v1402 = vld [vmem:[#allocation6 + $0x2f0] sm:$0xff]
    %v1403 = vld [vmem:[#allocation6 + $0x2f8] sm:$0xff]
    %v1404 = vld [vmem:[#allocation6 + $0x300] sm:$0xff]
    %v1405 = vld [vmem:[#allocation6 + $0x308] sm:$0xff]
    %v1406 = vld [vmem:[#allocation6 + $0x310] sm:$0xff]
    %v1407 = vld [vmem:[#allocation6 + $0x318] sm:$0xff]
    %v1408 = vld [vmem:[#allocation6 + $0x320] sm:$0xff]
    %v1409 = vld [vmem:[#allocation6 + $0x328] sm:$0xff]
    %v1410 = vld [vmem:[#allocation6 + $0x330] sm:$0xff]
    %v1411 = vld [vmem:[#allocation6 + $0x338] sm:$0xff]
    %v1412 = vld [vmem:[#allocation6 + $0x340] sm:$0xff]
    %v1413 = vld [vmem:[#allocation6 + $0x348] sm:$0xff]
    %v1414 = vld [vmem:[#allocation6 + $0x350] sm:$0xff]
    %v1415 = vld [vmem:[#allocation6 + $0x358] sm:$0xff]
    %v1416 = vld [vmem:[#allocation6 + $0x360] sm:$0xff]
    %v1417 = vld [vmem:[#allocation6 + $0x368] sm:$0xff]
    %v1418 = vld [vmem:[#allocation6 + $0x370] sm:$0xff]
    %v1419 = vld [vmem:[#allocation6 + $0x378] sm:$0xff]
    %v1420 = vld [vmem:[#allocation6 + $0x380] sm:$0xff]
    %v1421 = vld [vmem:[#allocation6 + $0x388] sm:$0xff]
    %v1422 = vld [vmem:[#allocation6 + $0x390] sm:$0xff]
    %v1423 = vld [vmem:[#allocation6 + $0x398] sm:$0xff]
    %v1424 = vld [vmem:[#allocation6 + $0x3a0] sm:$0xff]
    %v1425 = vld [vmem:[#allocation6 + $0x3a8] sm:$0xff]
    %v1426 = vld [vmem:[#allocation6 + $0x3b0] sm:$0xff]
    %v1427 = vld [vmem:[#allocation6 + $0x3b8] sm:$0xff]
    %v1428 = vld [vmem:[#allocation6 + $0x3c0] sm:$0xff]
    %v1429 = vld [vmem:[#allocation6 + $0x3c8] sm:$0xff]
    %v1430 = vld [vmem:[#allocation6 + $0x3d0] sm:$0xff]
    %v1431 = vld [vmem:[#allocation6 + $0x3d8] sm:$0xff]
    %v1432 = vld [vmem:[#allocation6 + $0x3e0] sm:$0xff]
    %v1433 = vld [vmem:[#allocation6 + $0x3e8] sm:$0xff]
    %v1434 = vld [vmem:[#allocation6 + $0x3f0] sm:$0xff]
    %v1435 = vld [vmem:[#allocation6 + $0x3f8] sm:$0xff]
    %v1436 = vld [vmem:[%s6] sm:$0xf]
    %v1438 = vlaneseq
    %v1439 = vshrl.u32 %v1438, 7
    %v1440 = vsub.s32 0, %v1439
    %v1441 = vrot.slane %v1436, %v1440
    %v1442 = vlaneseq
    %v1443 = vshrl.u32 %v1442, 7
    %v1444 = vsub.s32 1, %v1443
    %v1445 = vrot.slane %v1436, %v1444
    %v1446 = vlaneseq
    %v1447 = vshrl.u32 %v1446, 7
    %v1448 = vsub.s32 2, %v1447
    %v1449 = vrot.slane %v1436, %v1448
    %v1450 = vlaneseq
    %v1451 = vshrl.u32 %v1450, 7
    %v1452 = vsub.s32 3, %v1451
    %v1453 = vrot.slane %v1436, %v1452
    %v1586 = vunpack.c.l.b16 %v1308
    %v1587 = vunpack.c.h.b16 %v1308
    %v1588 = vunpack.c.l.b16 %v1309
    %v1589 = vunpack.c.h.b16 %v1309
    %v1590 = vunpack.c.l.b16 %v1310
    %v1591 = vunpack.c.h.b16 %v1310
    %v1592 = vunpack.c.l.b16 %v1311
    %v1593 = vunpack.c.h.b16 %v1311
    %v1594 = vunpack.c.l.b16 %v1312
    %v1595 = vunpack.c.h.b16 %v1312
    %v1596 = vunpack.c.l.b16 %v1313
    %v1597 = vunpack.c.h.b16 %v1313
    %v1598 = vunpack.c.l.b16 %v1314
    %v1599 = vunpack.c.h.b16 %v1314
    %v1600 = vunpack.c.l.b16 %v1315
    %v1601 = vunpack.c.h.b16 %v1315
    %v1602 = vunpack.c.l.b16 %v1316
    %v1603 = vunpack.c.h.b16 %v1316
    %v1604 = vunpack.c.l.b16 %v1317
    %v1605 = vunpack.c.h.b16 %v1317
    %v1606 = vunpack.c.l.b16 %v1318
    %v1607 = vunpack.c.h.b16 %v1318
    %v1608 = vunpack.c.l.b16 %v1319
    %v1609 = vunpack.c.h.b16 %v1319
    %v1610 = vunpack.c.l.b16 %v1320
    %v1611 = vunpack.c.h.b16 %v1320
    %v1612 = vunpack.c.l.b16 %v1321
    %v1613 = vunpack.c.h.b16 %v1321
    %v1614 = vunpack.c.l.b16 %v1322
    %v1615 = vunpack.c.h.b16 %v1322
    %v1616 = vunpack.c.l.b16 %v1323
    %v1617 = vunpack.c.h.b16 %v1323
    %v1618 = vunpack.c.l.b16 %v1324
    %v1619 = vunpack.c.h.b16 %v1324
    %v1620 = vunpack.c.l.b16 %v1325
    %v1621 = vunpack.c.h.b16 %v1325
    %v1622 = vunpack.c.l.b16 %v1326
    %v1623 = vunpack.c.h.b16 %v1326
    %v1624 = vunpack.c.l.b16 %v1327
    %v1625 = vunpack.c.h.b16 %v1327
    %v1626 = vunpack.c.l.b16 %v1328
    %v1627 = vunpack.c.h.b16 %v1328
    %v1628 = vunpack.c.l.b16 %v1329
    %v1629 = vunpack.c.h.b16 %v1329
    %v1630 = vunpack.c.l.b16 %v1330
    %v1631 = vunpack.c.h.b16 %v1330
    %v1632 = vunpack.c.l.b16 %v1331
    %v1633 = vunpack.c.h.b16 %v1331
    %v1634 = vunpack.c.l.b16 %v1332
    %v1635 = vunpack.c.h.b16 %v1332
    %v1636 = vunpack.c.l.b16 %v1333
    %v1637 = vunpack.c.h.b16 %v1333
    %v1638 = vunpack.c.l.b16 %v1334
    %v1639 = vunpack.c.h.b16 %v1334
    %v1640 = vunpack.c.l.b16 %v1335
    %v1641 = vunpack.c.h.b16 %v1335
    %v1642 = vunpack.c.l.b16 %v1336
    %v1643 = vunpack.c.h.b16 %v1336
    %v1644 = vunpack.c.l.b16 %v1337
    %v1645 = vunpack.c.h.b16 %v1337
    %v1646 = vunpack.c.l.b16 %v1338
    %v1647 = vunpack.c.h.b16 %v1338
    %v1648 = vunpack.c.l.b16 %v1339
    %v1649 = vunpack.c.h.b16 %v1339
    %v1650 = vunpack.c.l.b16 %v1340
    %v1651 = vunpack.c.h.b16 %v1340
    %v1652 = vunpack.c.l.b16 %v1341
    %v1653 = vunpack.c.h.b16 %v1341
    %v1654 = vunpack.c.l.b16 %v1342
    %v1655 = vunpack.c.h.b16 %v1342
    %v1656 = vunpack.c.l.b16 %v1343
    %v1657 = vunpack.c.h.b16 %v1343
    %v1658 = vunpack.c.l.b16 %v1344
    %v1659 = vunpack.c.h.b16 %v1344
    %v1660 = vunpack.c.l.b16 %v1345
    %v1661 = vunpack.c.h.b16 %v1345
    %v1662 = vunpack.c.l.b16 %v1346
    %v1663 = vunpack.c.h.b16 %v1346
    %v1664 = vunpack.c.l.b16 %v1347
    %v1665 = vunpack.c.h.b16 %v1347
    %v1666 = vunpack.c.l.b16 %v1348
    %v1667 = vunpack.c.h.b16 %v1348
    %v1668 = vunpack.c.l.b16 %v1349
    %v1669 = vunpack.c.h.b16 %v1349
    %v1670 = vunpack.c.l.b16 %v1350
    %v1671 = vunpack.c.h.b16 %v1350
    %v1672 = vunpack.c.l.b16 %v1351
    %v1673 = vunpack.c.h.b16 %v1351
    %v1674 = vunpack.c.l.b16 %v1352
    %v1675 = vunpack.c.h.b16 %v1352
    %v1676 = vunpack.c.l.b16 %v1353
    %v1677 = vunpack.c.h.b16 %v1353
    %v1678 = vunpack.c.l.b16 %v1354
    %v1679 = vunpack.c.h.b16 %v1354
    %v1680 = vunpack.c.l.b16 %v1355
    %v1681 = vunpack.c.h.b16 %v1355
    %v1682 = vunpack.c.l.b16 %v1356
    %v1683 = vunpack.c.h.b16 %v1356
    %v1684 = vunpack.c.l.b16 %v1357
    %v1685 = vunpack.c.h.b16 %v1357
    %v1686 = vunpack.c.l.b16 %v1358
    %v1687 = vunpack.c.h.b16 %v1358
    %v1688 = vunpack.c.l.b16 %v1359
    %v1689 = vunpack.c.h.b16 %v1359
    %v1690 = vunpack.c.l.b16 %v1360
    %v1691 = vunpack.c.h.b16 %v1360
    %v1692 = vunpack.c.l.b16 %v1361
    %v1693 = vunpack.c.h.b16 %v1361
    %v1694 = vunpack.c.l.b16 %v1362
    %v1695 = vunpack.c.h.b16 %v1362
    %v1696 = vunpack.c.l.b16 %v1363
    %v1697 = vunpack.c.h.b16 %v1363
    %v1698 = vunpack.c.l.b16 %v1364
    %v1699 = vunpack.c.h.b16 %v1364
    %v1700 = vunpack.c.l.b16 %v1365
    %v1701 = vunpack.c.h.b16 %v1365
    %v1702 = vunpack.c.l.b16 %v1366
    %v1703 = vunpack.c.h.b16 %v1366
    %v1704 = vunpack.c.l.b16 %v1367
    %v1705 = vunpack.c.h.b16 %v1367
    %v1706 = vunpack.c.l.b16 %v1368
    %v1707 = vunpack.c.h.b16 %v1368
    %v1708 = vunpack.c.l.b16 %v1369
    %v1709 = vunpack.c.h.b16 %v1369
    %v1710 = vunpack.c.l.b16 %v1370
    %v1711 = vunpack.c.h.b16 %v1370
    %v1712 = vunpack.c.l.b16 %v1371
    %v1713 = vunpack.c.h.b16 %v1371
    %v1714 = vunpack.c.l.b16 %v1372
    %v1715 = vunpack.c.h.b16 %v1372
    %v1716 = vunpack.c.l.b16 %v1373
    %v1717 = vunpack.c.h.b16 %v1373
    %v1718 = vunpack.c.l.b16 %v1374
    %v1719 = vunpack.c.h.b16 %v1374
    %v1720 = vunpack.c.l.b16 %v1375
    %v1721 = vunpack.c.h.b16 %v1375
    %v1722 = vunpack.c.l.b16 %v1376
    %v1723 = vunpack.c.h.b16 %v1376
    %v1724 = vunpack.c.l.b16 %v1377
    %v1725 = vunpack.c.h.b16 %v1377
    %v1726 = vunpack.c.l.b16 %v1378
    %v1727 = vunpack.c.h.b16 %v1378
    %v1728 = vunpack.c.l.b16 %v1379
    %v1729 = vunpack.c.h.b16 %v1379
    %v1730 = vunpack.c.l.b16 %v1380
    %v1731 = vunpack.c.h.b16 %v1380
    %v1732 = vunpack.c.l.b16 %v1381
    %v1733 = vunpack.c.h.b16 %v1381
    %v1734 = vunpack.c.l.b16 %v1382
    %v1735 = vunpack.c.h.b16 %v1382
    %v1736 = vunpack.c.l.b16 %v1383
    %v1737 = vunpack.c.h.b16 %v1383
    %v1738 = vunpack.c.l.b16 %v1384
    %v1739 = vunpack.c.h.b16 %v1384
    %v1740 = vunpack.c.l.b16 %v1385
    %v1741 = vunpack.c.h.b16 %v1385
    %v1742 = vunpack.c.l.b16 %v1386
    %v1743 = vunpack.c.h.b16 %v1386
    %v1744 = vunpack.c.l.b16 %v1387
    %v1745 = vunpack.c.h.b16 %v1387
    %v1746 = vunpack.c.l.b16 %v1388
    %v1747 = vunpack.c.h.b16 %v1388
    %v1748 = vunpack.c.l.b16 %v1389
    %v1749 = vunpack.c.h.b16 %v1389
    %v1750 = vunpack.c.l.b16 %v1390
    %v1751 = vunpack.c.h.b16 %v1390
    %v1752 = vunpack.c.l.b16 %v1391
    %v1753 = vunpack.c.h.b16 %v1391
    %v1754 = vunpack.c.l.b16 %v1392
    %v1755 = vunpack.c.h.b16 %v1392
    %v1756 = vunpack.c.l.b16 %v1393
    %v1757 = vunpack.c.h.b16 %v1393
    %v1758 = vunpack.c.l.b16 %v1394
    %v1759 = vunpack.c.h.b16 %v1394
    %v1760 = vunpack.c.l.b16 %v1395
    %v1761 = vunpack.c.h.b16 %v1395
    %v1762 = vunpack.c.l.b16 %v1396
    %v1763 = vunpack.c.h.b16 %v1396
    %v1764 = vunpack.c.l.b16 %v1397
    %v1765 = vunpack.c.h.b16 %v1397
    %v1766 = vunpack.c.l.b16 %v1398
    %v1767 = vunpack.c.h.b16 %v1398
    %v1768 = vunpack.c.l.b16 %v1399
    %v1769 = vunpack.c.h.b16 %v1399
    %v1770 = vunpack.c.l.b16 %v1400
    %v1771 = vunpack.c.h.b16 %v1400
    %v1772 = vunpack.c.l.b16 %v1401
    %v1773 = vunpack.c.h.b16 %v1401
    %v1774 = vunpack.c.l.b16 %v1402
    %v1775 = vunpack.c.h.b16 %v1402
    %v1776 = vunpack.c.l.b16 %v1403
    %v1777 = vunpack.c.h.b16 %v1403
    %v1778 = vunpack.c.l.b16 %v1404
    %v1779 = vunpack.c.h.b16 %v1404
    %v1780 = vunpack.c.l.b16 %v1405
    %v1781 = vunpack.c.h.b16 %v1405
    %v1782 = vunpack.c.l.b16 %v1406
    %v1783 = vunpack.c.h.b16 %v1406
    %v1784 = vunpack.c.l.b16 %v1407
    %v1785 = vunpack.c.h.b16 %v1407
    %v1786 = vunpack.c.l.b16 %v1408
    %v1787 = vunpack.c.h.b16 %v1408
    %v1788 = vunpack.c.l.b16 %v1409
    %v1789 = vunpack.c.h.b16 %v1409
    %v1790 = vunpack.c.l.b16 %v1410
    %v1791 = vunpack.c.h.b16 %v1410
    %v1792 = vunpack.c.l.b16 %v1411
    %v1793 = vunpack.c.h.b16 %v1411
    %v1794 = vunpack.c.l.b16 %v1412
    %v1795 = vunpack.c.h.b16 %v1412
    %v1796 = vunpack.c.l.b16 %v1413
    %v1797 = vunpack.c.h.b16 %v1413
    %v1798 = vunpack.c.l.b16 %v1414
    %v1799 = vunpack.c.h.b16 %v1414
    %v1800 = vunpack.c.l.b16 %v1415
    %v1801 = vunpack.c.h.b16 %v1415
    %v1802 = vunpack.c.l.b16 %v1416
    %v1803 = vunpack.c.h.b16 %v1416
    %v1804 = vunpack.c.l.b16 %v1417
    %v1805 = vunpack.c.h.b16 %v1417
    %v1806 = vunpack.c.l.b16 %v1418
    %v1807 = vunpack.c.h.b16 %v1418
    %v1808 = vunpack.c.l.b16 %v1419
    %v1809 = vunpack.c.h.b16 %v1419
    %v1810 = vunpack.c.l.b16 %v1420
    %v1811 = vunpack.c.h.b16 %v1420
    %v1812 = vunpack.c.l.b16 %v1421
    %v1813 = vunpack.c.h.b16 %v1421
    %v1814 = vunpack.c.l.b16 %v1422
    %v1815 = vunpack.c.h.b16 %v1422
    %v1816 = vunpack.c.l.b16 %v1423
    %v1817 = vunpack.c.h.b16 %v1423
    %v1818 = vunpack.c.l.b16 %v1424
    %v1819 = vunpack.c.h.b16 %v1424
    %v1820 = vunpack.c.l.b16 %v1425
    %v1821 = vunpack.c.h.b16 %v1425
    %v1822 = vunpack.c.l.b16 %v1426
    %v1823 = vunpack.c.h.b16 %v1426
    %v1824 = vunpack.c.l.b16 %v1427
    %v1825 = vunpack.c.h.b16 %v1427
    %v1826 = vunpack.c.l.b16 %v1428
    %v1827 = vunpack.c.h.b16 %v1428
    %v1828 = vunpack.c.l.b16 %v1429
    %v1829 = vunpack.c.h.b16 %v1429
    %v1830 = vunpack.c.l.b16 %v1430
    %v1831 = vunpack.c.h.b16 %v1430
    %v1832 = vunpack.c.l.b16 %v1431
    %v1833 = vunpack.c.h.b16 %v1431
    %v1834 = vunpack.c.l.b16 %v1432
    %v1835 = vunpack.c.h.b16 %v1432
    %v1836 = vunpack.c.l.b16 %v1433
    %v1837 = vunpack.c.h.b16 %v1433
    %v1838 = vunpack.c.l.b16 %v1434
    %v1839 = vunpack.c.h.b16 %v1434
    %v1840 = vunpack.c.l.b16 %v1435
    %v1841 = vunpack.c.h.b16 %v1435
    %v1842 = vpack.c.b16 %v1590, %v1586
    %v1843 = vpack.c.b16 %v1591, %v1587
    %v1844 = vpack.c.b16 %v1592, %v1588
    %v1845 = vpack.c.b16 %v1593, %v1589
    %v1846 = vpack.c.b16 %v1598, %v1594
    %v1847 = vpack.c.b16 %v1599, %v1595
    %v1848 = vpack.c.b16 %v1600, %v1596
    %v1849 = vpack.c.b16 %v1601, %v1597
    %v1850 = vpack.c.b16 %v1606, %v1602
    %v1851 = vpack.c.b16 %v1607, %v1603
    %v1852 = vpack.c.b16 %v1608, %v1604
    %v1853 = vpack.c.b16 %v1609, %v1605
    %v1854 = vpack.c.b16 %v1614, %v1610
    %v1855 = vpack.c.b16 %v1615, %v1611
    %v1856 = vpack.c.b16 %v1616, %v1612
    %v1857 = vpack.c.b16 %v1617, %v1613
    %v1858 = vpack.c.b16 %v1622, %v1618
    %v1859 = vpack.c.b16 %v1623, %v1619
    %v1860 = vpack.c.b16 %v1624, %v1620
    %v1861 = vpack.c.b16 %v1625, %v1621
    %v1862 = vpack.c.b16 %v1630, %v1626
    %v1863 = vpack.c.b16 %v1631, %v1627
    %v1864 = vpack.c.b16 %v1632, %v1628
    %v1865 = vpack.c.b16 %v1633, %v1629
    %v1866 = vpack.c.b16 %v1638, %v1634
    %v1867 = vpack.c.b16 %v1639, %v1635
    %v1868 = vpack.c.b16 %v1640, %v1636
    %v1869 = vpack.c.b16 %v1641, %v1637
    %v1870 = vpack.c.b16 %v1646, %v1642
    %v1871 = vpack.c.b16 %v1647, %v1643
    %v1872 = vpack.c.b16 %v1648, %v1644
    %v1873 = vpack.c.b16 %v1649, %v1645
    %v1874 = vpack.c.b16 %v1654, %v1650
    %v1875 = vpack.c.b16 %v1655, %v1651
    %v1876 = vpack.c.b16 %v1656, %v1652
    %v1877 = vpack.c.b16 %v1657, %v1653
    %v1878 = vpack.c.b16 %v1662, %v1658
    %v1879 = vpack.c.b16 %v1663, %v1659
    %v1880 = vpack.c.b16 %v1664, %v1660
    %v1881 = vpack.c.b16 %v1665, %v1661
    %v1882 = vpack.c.b16 %v1670, %v1666
    %v1883 = vpack.c.b16 %v1671, %v1667
    %v1884 = vpack.c.b16 %v1672, %v1668
    %v1885 = vpack.c.b16 %v1673, %v1669
    %v1886 = vpack.c.b16 %v1678, %v1674
    %v1887 = vpack.c.b16 %v1679, %v1675
    %v1888 = vpack.c.b16 %v1680, %v1676
    %v1889 = vpack.c.b16 %v1681, %v1677
    %v1890 = vpack.c.b16 %v1686, %v1682
    %v1891 = vpack.c.b16 %v1687, %v1683
    %v1892 = vpack.c.b16 %v1688, %v1684
    %v1893 = vpack.c.b16 %v1689, %v1685
    %v1894 = vpack.c.b16 %v1694, %v1690
    %v1895 = vpack.c.b16 %v1695, %v1691
    %v1896 = vpack.c.b16 %v1696, %v1692
    %v1897 = vpack.c.b16 %v1697, %v1693
    %v1898 = vpack.c.b16 %v1702, %v1698
    %v1899 = vpack.c.b16 %v1703, %v1699
    %v1900 = vpack.c.b16 %v1704, %v1700
    %v1901 = vpack.c.b16 %v1705, %v1701
    %v1902 = vpack.c.b16 %v1710, %v1706
    %v1903 = vpack.c.b16 %v1711, %v1707
    %v1904 = vpack.c.b16 %v1712, %v1708
    %v1905 = vpack.c.b16 %v1713, %v1709
    %v1906 = vpack.c.b16 %v1718, %v1714
    %v1907 = vpack.c.b16 %v1719, %v1715
    %v1908 = vpack.c.b16 %v1720, %v1716
    %v1909 = vpack.c.b16 %v1721, %v1717
    %v1910 = vpack.c.b16 %v1726, %v1722
    %v1911 = vpack.c.b16 %v1727, %v1723
    %v1912 = vpack.c.b16 %v1728, %v1724
    %v1913 = vpack.c.b16 %v1729, %v1725
    %v1914 = vpack.c.b16 %v1734, %v1730
    %v1915 = vpack.c.b16 %v1735, %v1731
    %v1916 = vpack.c.b16 %v1736, %v1732
    %v1917 = vpack.c.b16 %v1737, %v1733
    %v1918 = vpack.c.b16 %v1742, %v1738
    %v1919 = vpack.c.b16 %v1743, %v1739
    %v1920 = vpack.c.b16 %v1744, %v1740
    %v1921 = vpack.c.b16 %v1745, %v1741
    %v1922 = vpack.c.b16 %v1750, %v1746
    %v1923 = vpack.c.b16 %v1751, %v1747
    %v1924 = vpack.c.b16 %v1752, %v1748
    %v1925 = vpack.c.b16 %v1753, %v1749
    %v1926 = vpack.c.b16 %v1758, %v1754
    %v1927 = vpack.c.b16 %v1759, %v1755
    %v1928 = vpack.c.b16 %v1760, %v1756
    %v1929 = vpack.c.b16 %v1761, %v1757
    %v1930 = vpack.c.b16 %v1766, %v1762
    %v1931 = vpack.c.b16 %v1767, %v1763
    %v1932 = vpack.c.b16 %v1768, %v1764
    %v1933 = vpack.c.b16 %v1769, %v1765
    %v1934 = vpack.c.b16 %v1774, %v1770
    %v1935 = vpack.c.b16 %v1775, %v1771
    %v1936 = vpack.c.b16 %v1776, %v1772
    %v1937 = vpack.c.b16 %v1777, %v1773
    %v1938 = vpack.c.b16 %v1782, %v1778
    %v1939 = vpack.c.b16 %v1783, %v1779
    %v1940 = vpack.c.b16 %v1784, %v1780
    %v1941 = vpack.c.b16 %v1785, %v1781
    %v1942 = vpack.c.b16 %v1790, %v1786
    %v1943 = vpack.c.b16 %v1791, %v1787
    %v1944 = vpack.c.b16 %v1792, %v1788
    %v1945 = vpack.c.b16 %v1793, %v1789
    %v1946 = vpack.c.b16 %v1798, %v1794
    %v1947 = vpack.c.b16 %v1799, %v1795
    %v1948 = vpack.c.b16 %v1800, %v1796
    %v1949 = vpack.c.b16 %v1801, %v1797
    %v1950 = vpack.c.b16 %v1806, %v1802
    %v1951 = vpack.c.b16 %v1807, %v1803
    %v1952 = vpack.c.b16 %v1808, %v1804
    %v1953 = vpack.c.b16 %v1809, %v1805
    %v1954 = vpack.c.b16 %v1814, %v1810
    %v1955 = vpack.c.b16 %v1815, %v1811
    %v1956 = vpack.c.b16 %v1816, %v1812
    %v1957 = vpack.c.b16 %v1817, %v1813
    %v1958 = vpack.c.b16 %v1822, %v1818
    %v1959 = vpack.c.b16 %v1823, %v1819
    %v1960 = vpack.c.b16 %v1824, %v1820
    %v1961 = vpack.c.b16 %v1825, %v1821
    %v1962 = vpack.c.b16 %v1830, %v1826
    %v1963 = vpack.c.b16 %v1831, %v1827
    %v1964 = vpack.c.b16 %v1832, %v1828
    %v1965 = vpack.c.b16 %v1833, %v1829
    %v1966 = vpack.c.b16 %v1838, %v1834
    %v1967 = vpack.c.b16 %v1839, %v1835
    %v1968 = vpack.c.b16 %v1840, %v1836
    %v1969 = vpack.c.b16 %v1841, %v1837
    %2098 = vmatprep.subr.bf16.mxu0 %v1871
    %2099 = vmatpush1.bf16.msra.mxu0 %v1870
    %2100 = vmatprep.subr.bf16.mxu0 %v1867
    %2101 = vmatpush1.bf16.msra.mxu0 %v1866
    %2102 = vmatprep.subr.bf16.mxu0 %v1863
    %2103 = vmatpush1.bf16.msra.mxu0 %v1862
    %2104 = vmatprep.subr.bf16.mxu0 %v1859
    %2105 = vmatpush1.bf16.msra.mxu0 %v1858
    %2106 = vmatprep.subr.bf16.mxu0 %v1855
    %2107 = vmatpush1.bf16.msra.mxu0 %v1854
    %2108 = vmatprep.subr.bf16.mxu0 %v1851
    %2109 = vmatpush1.bf16.msra.mxu0 %v1850
    %2110 = vmatprep.subr.bf16.mxu0 %v1847
    %2111 = vmatpush1.bf16.msra.mxu0 %v1846
    %2112 = vmatprep.subr.bf16.mxu0 %v1843
    %2113 = vmatpush1.bf16.msra.mxu0 %v1842
    %2114 = vmatprep.subr.bf16.mxu0 %v1903
    %2115 = vmatpush2.bf16.msra.mxu0 %v1902
    %2116 = vmatprep.subr.bf16.mxu0 %v1899
    %2117 = vmatpush2.bf16.msra.mxu0 %v1898
    %2118 = vmatprep.subr.bf16.mxu0 %v1895
    %2119 = vmatpush2.bf16.msra.mxu0 %v1894
    %2120 = vmatprep.subr.bf16.mxu0 %v1891
    %2121 = vmatpush2.bf16.msra.mxu0 %v1890
    %2122 = vmatprep.subr.bf16.mxu0 %v1887
    %2123 = vmatpush2.bf16.msra.mxu0 %v1886
    %2124 = vmatprep.subr.bf16.mxu0 %v1883
    %2125 = vmatpush2.bf16.msra.mxu0 %v1882
    %2126 = vmatprep.subr.bf16.mxu0 %v1879
    %2127 = vmatpush2.bf16.msra.mxu0 %v1878
    %2128 = vmatprep.subr.bf16.mxu0 %v1875
    %2129 = vmatpush2.bf16.msra.mxu0 %v1874
    %2130 = vmatprep.mubr.bf16.mxu0 %v1305
    %2131 = vmatmul.mubr.bf16.gmra.mxu0 %v1304
    %v2132 = vpop.f32.mrf.mxu0
    %v2133 = vadd.f32 %v1441, %v2132
    %v2134 = vpop.f32.mrf.mxu0
    %v2135 = vadd.f32 %v1445, %v2134
    %v2136 = vpop.f32.mrf.mxu0
    %v2137 = vadd.f32 %v1441, %v2136
    %v2138 = vpop.f32.mrf.mxu0
    %v2139 = vadd.f32 %v1445, %v2138
    %2140 = vdwg.mxu0
    %2141 = vmatprep.subr.bf16.mxu0 %v1935
    %2142 = vmatpush1.bf16.msra.mxu0 %v1934
    %2143 = vmatprep.subr.bf16.mxu0 %v1931
    %2144 = vmatpush1.bf16.msra.mxu0 %v1930
    %2145 = vmatprep.subr.bf16.mxu0 %v1927
    %2146 = vmatpush1.bf16.msra.mxu0 %v1926
    %2147 = vmatprep.subr.bf16.mxu0 %v1923
    %2148 = vmatpush1.bf16.msra.mxu0 %v1922
    %2149 = vmatprep.subr.bf16.mxu0 %v1919
    %2150 = vmatpush1.bf16.msra.mxu0 %v1918
    %2151 = vmatprep.subr.bf16.mxu0 %v1915
    %2152 = vmatpush1.bf16.msra.mxu0 %v1914
    %2153 = vmatprep.subr.bf16.mxu0 %v1911
    %2154 = vmatpush1.bf16.msra.mxu0 %v1910
    %2155 = vmatprep.subr.bf16.mxu0 %v1907
    %2156 = vmatpush1.bf16.msra.mxu0 %v1906
    %2157 = vmatprep.subr.bf16.mxu0 %v1967
    %2158 = vmatpush2.bf16.msra.mxu0 %v1966
    %2159 = vmatprep.subr.bf16.mxu0 %v1963
    %2160 = vmatpush2.bf16.msra.mxu0 %v1962
    %2161 = vmatprep.subr.bf16.mxu0 %v1959
    %2162 = vmatpush2.bf16.msra.mxu0 %v1958
    %2163 = vmatprep.subr.bf16.mxu0 %v1955
    %2164 = vmatpush2.bf16.msra.mxu0 %v1954
    %2165 = vmatprep.subr.bf16.mxu0 %v1951
    %2166 = vmatpush2.bf16.msra.mxu0 %v1950
    %2167 = vmatprep.subr.bf16.mxu0 %v1947
    %2168 = vmatpush2.bf16.msra.mxu0 %v1946
    %2169 = vmatprep.subr.bf16.mxu0 %v1943
    %2170 = vmatpush2.bf16.msra.mxu0 %v1942
    %2171 = vmatprep.subr.bf16.mxu0 %v1939
    %2172 = vmatpush2.bf16.msra.mxu0 %v1938
    %2173 = vmatprep.mubr.bf16.mxu0 %v1307
    %2174 = vmatmul.mubr.bf16.gmra.mxu0 %v1306
    %v2175 = vpop.f32.mrf.mxu0
    %v2176 = vadd.f32 %v2133, %v2175
    %v2177 = vpop.f32.mrf.mxu0
    %v2178 = vadd.f32 %v2135, %v2177
    %v2179 = vpop.f32.mrf.mxu0
    %v2180 = vadd.f32 %v2137, %v2179
    %v2181 = vpop.f32.mrf.mxu0
    %v2182 = vadd.f32 %v2139, %v2181
    %2183 = vdwg.mxu0
    %2184 = vmatprep.subr.bf16.mxu0 %v1873
    %2185 = vmatpush1.bf16.msra.mxu0 %v1872
    %2186 = vmatprep.subr.bf16.mxu0 %v1869
    %2187 = vmatpush1.bf16.msra.mxu0 %v1868
    %2188 = vmatprep.subr.bf16.mxu0 %v1865
    %2189 = vmatpush1.bf16.msra.mxu0 %v1864
    %2190 = vmatprep.subr.bf16.mxu0 %v1861
    %2191 = vmatpush1.bf16.msra.mxu0 %v1860
    %2192 = vmatprep.subr.bf16.mxu0 %v1857
    %2193 = vmatpush1.bf16.msra.mxu0 %v1856
    %2194 = vmatprep.subr.bf16.mxu0 %v1853
    %2195 = vmatpush1.bf16.msra.mxu0 %v1852
    %2196 = vmatprep.subr.bf16.mxu0 %v1849
    %2197 = vmatpush1.bf16.msra.mxu0 %v1848
    %2198 = vmatprep.subr.bf16.mxu0 %v1845
    %2199 = vmatpush1.bf16.msra.mxu0 %v1844
    %2200 = vmatprep.subr.bf16.mxu0 %v1905
    %2201 = vmatpush2.bf16.msra.mxu0 %v1904
    %2202 = vmatprep.subr.bf16.mxu0 %v1901
    %2203 = vmatpush2.bf16.msra.mxu0 %v1900
    %2204 = vmatprep.subr.bf16.mxu0 %v1897
    %2205 = vmatpush2.bf16.msra.mxu0 %v1896
    %2206 = vmatprep.subr.bf16.mxu0 %v1893
    %2207 = vmatpush2.bf16.msra.mxu0 %v1892
    %2208 = vmatprep.subr.bf16.mxu0 %v1889
    %2209 = vmatpush2.bf16.msra.mxu0 %v1888
    %2210 = vmatprep.subr.bf16.mxu0 %v1885
    %2211 = vmatpush2.bf16.msra.mxu0 %v1884
    %2212 = vmatprep.subr.bf16.mxu0 %v1881
    %2213 = vmatpush2.bf16.msra.mxu0 %v1880
    %2214 = vmatprep.subr.bf16.mxu0 %v1877
    %2215 = vmatpush2.bf16.msra.mxu0 %v1876
    %2216 = vmatprep.mubr.bf16.mxu0 %v1305
    %2217 = vmatmul.mubr.bf16.gmra.mxu0 %v1304
    %v2218 = vpop.f32.mrf.mxu0
    %v2219 = vadd.f32 %v1449, %v2218
    %v2220 = vpop.f32.mrf.mxu0
    %v2221 = vadd.f32 %v1453, %v2220
    %v2222 = vpop.f32.mrf.mxu0
    %v2223 = vadd.f32 %v1449, %v2222
    %v2224 = vpop.f32.mrf.mxu0
    %v2225 = vadd.f32 %v1453, %v2224
    %2226 = vdwg.mxu0
    %2227 = vmatprep.subr.bf16.mxu0 %v1937
    %2228 = vmatpush1.bf16.msra.mxu0 %v1936
    %2229 = vmatprep.subr.bf16.mxu0 %v1933
    %2230 = vmatpush1.bf16.msra.mxu0 %v1932
    %2231 = vmatprep.subr.bf16.mxu0 %v1929
    %2232 = vmatpush1.bf16.msra.mxu0 %v1928
    %2233 = vmatprep.subr.bf16.mxu0 %v1925
    %2234 = vmatpush1.bf16.msra.mxu0 %v1924
    %2235 = vmatprep.subr.bf16.mxu0 %v1921
    %2236 = vmatpush1.bf16.msra.mxu0 %v1920
    %2237 = vmatprep.subr.bf16.mxu0 %v1917
    %2238 = vmatpush1.bf16.msra.mxu0 %v1916
    %2239 = vmatprep.subr.bf16.mxu0 %v1913
    %2240 = vmatpush1.bf16.msra.mxu0 %v1912
    %2241 = vmatprep.subr.bf16.mxu0 %v1909
    %2242 = vmatpush1.bf16.msra.mxu0 %v1908
    %2243 = vmatprep.subr.bf16.mxu0 %v1969
    %2244 = vmatpush2.bf16.msra.mxu0 %v1968
    %2245 = vmatprep.subr.bf16.mxu0 %v1965
    %2246 = vmatpush2.bf16.msra.mxu0 %v1964
    %2247 = vmatprep.subr.bf16.mxu0 %v1961
    %2248 = vmatpush2.bf16.msra.mxu0 %v1960
    %2249 = vmatprep.subr.bf16.mxu0 %v1957
    %2250 = vmatpush2.bf16.msra.mxu0 %v1956
    %2251 = vmatprep.subr.bf16.mxu0 %v1953
    %2252 = vmatpush2.bf16.msra.mxu0 %v1952
    %2253 = vmatprep.subr.bf16.mxu0 %v1949
    %2254 = vmatpush2.bf16.msra.mxu0 %v1948
    %2255 = vmatprep.subr.bf16.mxu0 %v1945
    %2256 = vmatpush2.bf16.msra.mxu0 %v1944
    %2257 = vmatprep.subr.bf16.mxu0 %v1941
    %2258 = vmatpush2.bf16.msra.mxu0 %v1940
    %2259 = vmatprep.mubr.bf16.mxu0 %v1307
    %2260 = vmatmul.mubr.bf16.gmra.mxu0 %v1306
    %v2261 = vpop.f32.mrf.mxu0
    %v2262 = vadd.f32 %v2219, %v2261
    %v2263 = vpop.f32.mrf.mxu0
    %v2264 = vadd.f32 %v2221, %v2263
    %v2265 = vpop.f32.mrf.mxu0
    %v2266 = vadd.f32 %v2223, %v2265
    %v2267 = vpop.f32.mrf.mxu0
    %v2268 = vadd.f32 %v2225, %v2267
    %2269 = vdwg.mxu0
    %v2270 = vmax.f32 %v2176, 0.0
    %v2271 = vmax.f32 %v2178, 0.0
    %v2272 = vmax.f32 %v2262, 0.0
    %v2273 = vmax.f32 %v2264, 0.0
    %v2274 = vmax.f32 %v2180, 0.0
    %v2275 = vmax.f32 %v2182, 0.0
    %v2276 = vmax.f32 %v2266, 0.0
    %v2277 = vmax.f32 %v2268, 0.0
    %v2278 = vpack.c.bf16 %v2274, %v2270
    %v2279 = vpack.c.bf16 %v2275, %v2271
    %v2280 = vpack.c.bf16 %v2276, %v2272
    %v2281 = vpack.c.bf16 %v2277, %v2273
    %v2282 = vld [vmem:[#allocation7] sm:$0xf]
    %v2283 = vld [vmem:[#allocation7 + $0x4] sm:$0xf]
    %v2284 = vld [vmem:[#allocation7 + $0x8] sm:$0xf]
    %v2285 = vld [vmem:[#allocation7 + $0xc] sm:$0xf]
    %v2286 = vld [vmem:[#allocation7 + $0x10] sm:$0xf]
    %v2287 = vld [vmem:[#allocation7 + $0x14] sm:$0xf]
    %v2288 = vld [vmem:[#allocation7 + $0x18] sm:$0xf]
    %v2289 = vld [vmem:[#allocation7 + $0x1c] sm:$0xf]
    %v2290 = vld [vmem:[#allocation7 + $0x20] sm:$0xf]
    %v2291 = vld [vmem:[#allocation7 + $0x24] sm:$0xf]
    %v2292 = vld [vmem:[#allocation7 + $0x28] sm:$0xf]
    %v2293 = vld [vmem:[#allocation7 + $0x2c] sm:$0xf]
    %v2294 = vld [vmem:[#allocation7 + $0x30] sm:$0xf]
    %v2295 = vld [vmem:[#allocation7 + $0x34] sm:$0xf]
    %v2296 = vld [vmem:[#allocation7 + $0x38] sm:$0xf]
    %v2297 = vld [vmem:[#allocation7 + $0x3c] sm:$0xf]
    %v2298 = vld [vmem:[#allocation7 + $0x40] sm:$0xf]
    %v2299 = vld [vmem:[#allocation7 + $0x44] sm:$0xf]
    %v2300 = vld [vmem:[#allocation7 + $0x48] sm:$0xf]
    %v2301 = vld [vmem:[#allocation7 + $0x4c] sm:$0xf]
    %v2302 = vld [vmem:[#allocation7 + $0x50] sm:$0xf]
    %v2303 = vld [vmem:[#allocation7 + $0x54] sm:$0xf]
    %v2304 = vld [vmem:[#allocation7 + $0x58] sm:$0xf]
    %v2305 = vld [vmem:[#allocation7 + $0x5c] sm:$0xf]
    %v2306 = vld [vmem:[#allocation7 + $0x60] sm:$0xf]
    %v2307 = vld [vmem:[#allocation7 + $0x64] sm:$0xf]
    %v2308 = vld [vmem:[#allocation7 + $0x68] sm:$0xf]
    %v2309 = vld [vmem:[#allocation7 + $0x6c] sm:$0xf]
    %v2310 = vld [vmem:[#allocation7 + $0x70] sm:$0xf]
    %v2311 = vld [vmem:[#allocation7 + $0x74] sm:$0xf]
    %v2312 = vld [vmem:[#allocation7 + $0x78] sm:$0xf]
    %v2313 = vld [vmem:[#allocation7 + $0x7c] sm:$0xf]
    %v2314 = vld [vmem:[#allocation7 + $0x80] sm:$0xf]
    %v2315 = vld [vmem:[#allocation7 + $0x84] sm:$0xf]
    %v2316 = vld [vmem:[#allocation7 + $0x88] sm:$0xf]
    %v2317 = vld [vmem:[#allocation7 + $0x8c] sm:$0xf]
    %v2318 = vld [vmem:[#allocation7 + $0x90] sm:$0xf]
    %v2319 = vld [vmem:[#allocation7 + $0x94] sm:$0xf]
    %v2320 = vld [vmem:[#allocation7 + $0x98] sm:$0xf]
    %v2321 = vld [vmem:[#allocation7 + $0x9c] sm:$0xf]
    %v2322 = vld [vmem:[#allocation7 + $0xa0] sm:$0xf]
    %v2323 = vld [vmem:[#allocation7 + $0xa4] sm:$0xf]
    %v2324 = vld [vmem:[#allocation7 + $0xa8] sm:$0xf]
    %v2325 = vld [vmem:[#allocation7 + $0xac] sm:$0xf]
    %v2326 = vld [vmem:[#allocation7 + $0xb0] sm:$0xf]
    %v2327 = vld [vmem:[#allocation7 + $0xb4] sm:$0xf]
    %v2328 = vld [vmem:[#allocation7 + $0xb8] sm:$0xf]
    %v2329 = vld [vmem:[#allocation7 + $0xbc] sm:$0xf]
    %v2330 = vld [vmem:[#allocation7 + $0xc0] sm:$0xf]
    %v2331 = vld [vmem:[#allocation7 + $0xc4] sm:$0xf]
    %v2332 = vld [vmem:[#allocation7 + $0xc8] sm:$0xf]
    %v2333 = vld [vmem:[#allocation7 + $0xcc] sm:$0xf]
    %v2334 = vld [vmem:[#allocation7 + $0xd0] sm:$0xf]
    %v2335 = vld [vmem:[#allocation7 + $0xd4] sm:$0xf]
    %v2336 = vld [vmem:[#allocation7 + $0xd8] sm:$0xf]
    %v2337 = vld [vmem:[#allocation7 + $0xdc] sm:$0xf]
    %v2338 = vld [vmem:[#allocation7 + $0xe0] sm:$0xf]
    %v2339 = vld [vmem:[#allocation7 + $0xe4] sm:$0xf]
    %v2340 = vld [vmem:[#allocation7 + $0xe8] sm:$0xf]
    %v2341 = vld [vmem:[#allocation7 + $0xec] sm:$0xf]
    %v2342 = vld [vmem:[#allocation7 + $0xf0] sm:$0xf]
    %v2343 = vld [vmem:[#allocation7 + $0xf4] sm:$0xf]
    %v2344 = vld [vmem:[#allocation7 + $0xf8] sm:$0xf]
    %v2345 = vld [vmem:[#allocation7 + $0xfc] sm:$0xf]
    %v2346 = vld [vmem:[%s8] sm:$0x1]
    %v2348 = vlaneseq
    %v2349 = vshrl.u32 %v2348, 7
    %v2350 = vsub.s32 0, %v2349
    %v2351 = vrot.slane %v2346, %v2350
    %v2417 = vunpack.c.l.b16 %v2282
    %v2418 = vunpack.c.l.b16 %v2283
    %v2419 = vunpack.c.l.b16 %v2284
    %v2420 = vunpack.c.l.b16 %v2285
    %v2421 = vunpack.c.l.b16 %v2286
    %v2422 = vunpack.c.l.b16 %v2287
    %v2423 = vunpack.c.l.b16 %v2288
    %v2424 = vunpack.c.l.b16 %v2289
    %v2425 = vunpack.c.l.b16 %v2290
    %v2426 = vunpack.c.l.b16 %v2291
    %v2427 = vunpack.c.l.b16 %v2292
    %v2428 = vunpack.c.l.b16 %v2293
    %v2429 = vunpack.c.l.b16 %v2294
    %v2430 = vunpack.c.l.b16 %v2295
    %v2431 = vunpack.c.l.b16 %v2296
    %v2432 = vunpack.c.l.b16 %v2297
    %v2433 = vunpack.c.l.b16 %v2298
    %v2434 = vunpack.c.l.b16 %v2299
    %v2435 = vunpack.c.l.b16 %v2300
    %v2436 = vunpack.c.l.b16 %v2301
    %v2437 = vunpack.c.l.b16 %v2302
    %v2438 = vunpack.c.l.b16 %v2303
    %v2439 = vunpack.c.l.b16 %v2304
    %v2440 = vunpack.c.l.b16 %v2305
    %v2441 = vunpack.c.l.b16 %v2306
    %v2442 = vunpack.c.l.b16 %v2307
    %v2443 = vunpack.c.l.b16 %v2308
    %v2444 = vunpack.c.l.b16 %v2309
    %v2445 = vunpack.c.l.b16 %v2310
    %v2446 = vunpack.c.l.b16 %v2311
    %v2447 = vunpack.c.l.b16 %v2312
    %v2448 = vunpack.c.l.b16 %v2313
    %v2449 = vunpack.c.l.b16 %v2314
    %v2450 = vunpack.c.l.b16 %v2315
    %v2451 = vunpack.c.l.b16 %v2316
    %v2452 = vunpack.c.l.b16 %v2317
    %v2453 = vunpack.c.l.b16 %v2318
    %v2454 = vunpack.c.l.b16 %v2319
    %v2455 = vunpack.c.l.b16 %v2320
    %v2456 = vunpack.c.l.b16 %v2321
    %v2457 = vunpack.c.l.b16 %v2322
    %v2458 = vunpack.c.l.b16 %v2323
    %v2459 = vunpack.c.l.b16 %v2324
    %v2460 = vunpack.c.l.b16 %v2325
    %v2461 = vunpack.c.l.b16 %v2326
    %v2462 = vunpack.c.l.b16 %v2327
    %v2463 = vunpack.c.l.b16 %v2328
    %v2464 = vunpack.c.l.b16 %v2329
    %v2465 = vunpack.c.l.b16 %v2330
    %v2466 = vunpack.c.l.b16 %v2331
    %v2467 = vunpack.c.l.b16 %v2332
    %v2468 = vunpack.c.l.b16 %v2333
    %v2469 = vunpack.c.l.b16 %v2334
    %v2470 = vunpack.c.l.b16 %v2335
    %v2471 = vunpack.c.l.b16 %v2336
    %v2472 = vunpack.c.l.b16 %v2337
    %v2473 = vunpack.c.l.b16 %v2338
    %v2474 = vunpack.c.l.b16 %v2339
    %v2475 = vunpack.c.l.b16 %v2340
    %v2476 = vunpack.c.l.b16 %v2341
    %v2477 = vunpack.c.l.b16 %v2342
    %v2478 = vunpack.c.l.b16 %v2343
    %v2479 = vunpack.c.l.b16 %v2344
    %v2480 = vunpack.c.l.b16 %v2345
    %v2481 = vpack.c.b16 %v2418, %v2417
    %v2482 = vpack.c.b16 %v2420, %v2419
    %v2483 = vpack.c.b16 %v2422, %v2421
    %v2484 = vpack.c.b16 %v2424, %v2423
    %v2485 = vpack.c.b16 %v2426, %v2425
    %v2486 = vpack.c.b16 %v2428, %v2427
    %v2487 = vpack.c.b16 %v2430, %v2429
    %v2488 = vpack.c.b16 %v2432, %v2431
    %v2489 = vpack.c.b16 %v2434, %v2433
    %v2490 = vpack.c.b16 %v2436, %v2435
    %v2491 = vpack.c.b16 %v2438, %v2437
    %v2492 = vpack.c.b16 %v2440, %v2439
    %v2493 = vpack.c.b16 %v2442, %v2441
    %v2494 = vpack.c.b16 %v2444, %v2443
    %v2495 = vpack.c.b16 %v2446, %v2445
    %v2496 = vpack.c.b16 %v2448, %v2447
    %v2497 = vpack.c.b16 %v2450, %v2449
    %v2498 = vpack.c.b16 %v2452, %v2451
    %v2499 = vpack.c.b16 %v2454, %v2453
    %v2500 = vpack.c.b16 %v2456, %v2455
    %v2501 = vpack.c.b16 %v2458, %v2457
    %v2502 = vpack.c.b16 %v2460, %v2459
    %v2503 = vpack.c.b16 %v2462, %v2461
    %v2504 = vpack.c.b16 %v2464, %v2463
    %v2505 = vpack.c.b16 %v2466, %v2465
    %v2506 = vpack.c.b16 %v2468, %v2467
    %v2507 = vpack.c.b16 %v2470, %v2469
    %v2508 = vpack.c.b16 %v2472, %v2471
    %v2509 = vpack.c.b16 %v2474, %v2473
    %v2510 = vpack.c.b16 %v2476, %v2475
    %v2511 = vpack.c.b16 %v2478, %v2477
    %v2512 = vpack.c.b16 %v2480, %v2479
    %2545 = vmatprep.subr.bf16.mxu0 0
    %2546 = vmatpush1.bf16.msra.mxu0 %v2488
    %2547 = vmatprep.subr.bf16.mxu0 0
    %2548 = vmatpush1.bf16.msra.mxu0 %v2487
    %2549 = vmatprep.subr.bf16.mxu0 0
    %2550 = vmatpush1.bf16.msra.mxu0 %v2486
    %2551 = vmatprep.subr.bf16.mxu0 0
    %2552 = vmatpush1.bf16.msra.mxu0 %v2485
    %2553 = vmatprep.subr.bf16.mxu0 0
    %2554 = vmatpush1.bf16.msra.mxu0 %v2484
    %2555 = vmatprep.subr.bf16.mxu0 0
    %2556 = vmatpush1.bf16.msra.mxu0 %v2483
    %2557 = vmatprep.subr.bf16.mxu0 0
    %2558 = vmatpush1.bf16.msra.mxu0 %v2482
    %2559 = vmatprep.subr.bf16.mxu0 0
    %2560 = vmatpush1.bf16.msra.mxu0 %v2481
    %2561 = vmatprep.subr.bf16.mxu0 0
    %2562 = vmatpush2.bf16.msra.mxu0 %v2496
    %2563 = vmatprep.subr.bf16.mxu0 0
    %2564 = vmatpush2.bf16.msra.mxu0 %v2495
    %2565 = vmatprep.subr.bf16.mxu0 0
    %2566 = vmatpush2.bf16.msra.mxu0 %v2494
    %2567 = vmatprep.subr.bf16.mxu0 0
    %2568 = vmatpush2.bf16.msra.mxu0 %v2493
    %2569 = vmatprep.subr.bf16.mxu0 0
    %2570 = vmatpush2.bf16.msra.mxu0 %v2492
    %2571 = vmatprep.subr.bf16.mxu0 0
    %2572 = vmatpush2.bf16.msra.mxu0 %v2491
    %2573 = vmatprep.subr.bf16.mxu0 0
    %2574 = vmatpush2.bf16.msra.mxu0 %v2490
    %2575 = vmatprep.subr.bf16.mxu0 0
    %2576 = vmatpush2.bf16.msra.mxu0 %v2489
    %2577 = vmatprep.mubr.bf16.mxu0 %v2279
    %2578 = vmatmul.mubr.bf16.gmra.mxu0 %v2278
    %v2579 = vpop.f32.mrf.mxu0
    %v2580 = vadd.f32 %v2351, %v2579
    %v2581 = vpop.f32.mrf.mxu0
    %v2582 = vpop.f32.mrf.mxu0
    %v2583 = vadd.f32 %v2351, %v2582
    %v2584 = vpop.f32.mrf.mxu0
    %2585 = vdwg.mxu0
    %2586 = vmatprep.subr.bf16.mxu0 0
    %2587 = vmatpush1.bf16.msra.mxu0 %v2504
    %2588 = vmatprep.subr.bf16.mxu0 0
    %2589 = vmatpush1.bf16.msra.mxu0 %v2503
    %2590 = vmatprep.subr.bf16.mxu0 0
    %2591 = vmatpush1.bf16.msra.mxu0 %v2502
    %2592 = vmatprep.subr.bf16.mxu0 0
    %2593 = vmatpush1.bf16.msra.mxu0 %v2501
    %2594 = vmatprep.subr.bf16.mxu0 0
    %2595 = vmatpush1.bf16.msra.mxu0 %v2500
    %2596 = vmatprep.subr.bf16.mxu0 0
    %2597 = vmatpush1.bf16.msra.mxu0 %v2499
    %2598 = vmatprep.subr.bf16.mxu0 0
    %2599 = vmatpush1.bf16.msra.mxu0 %v2498
    %2600 = vmatprep.subr.bf16.mxu0 0
    %2601 = vmatpush1.bf16.msra.mxu0 %v2497
    %2602 = vmatprep.subr.bf16.mxu0 0
    %2603 = vmatpush2.bf16.msra.mxu0 %v2512
    %2604 = vmatprep.subr.bf16.mxu0 0
    %2605 = vmatpush2.bf16.msra.mxu0 %v2511
    %2606 = vmatprep.subr.bf16.mxu0 0
    %2607 = vmatpush2.bf16.msra.mxu0 %v2510
    %2608 = vmatprep.subr.bf16.mxu0 0
    %2609 = vmatpush2.bf16.msra.mxu0 %v2509
    %2610 = vmatprep.subr.bf16.mxu0 0
    %2611 = vmatpush2.bf16.msra.mxu0 %v2508
    %2612 = vmatprep.subr.bf16.mxu0 0
    %2613 = vmatpush2.bf16.msra.mxu0 %v2507
    %2614 = vmatprep.subr.bf16.mxu0 0
    %2615 = vmatpush2.bf16.msra.mxu0 %v2506
    %2616 = vmatprep.subr.bf16.mxu0 0
    %2617 = vmatpush2.bf16.msra.mxu0 %v2505
    %2618 = vmatprep.mubr.bf16.mxu0 %v2281
    %2619 = vmatmul.mubr.bf16.gmra.mxu0 %v2280
    %v2620 = vpop.f32.mrf.mxu0
    %v2621 = vadd.f32 %v2580, %v2620
    %v2622 = vpop.f32.mrf.mxu0
    %v2623 = vpop.f32.mrf.mxu0
    %v2624 = vadd.f32 %v2583, %v2623
    %v2625 = vpop.f32.mrf.mxu0
    %2626 = vdwg.mxu0
    %v2627 = vmax.f32 %v2621, 0.0
    %v2628 = vmax.f32 %v2624, 0.0
    %v2629 = vpack.c.bf16 %v2628, %v2627
    %v2630 = vld [vmem:[#allocation9] sm:$0xf]
    %v2631 = vld [vmem:[#allocation9 + $0x4] sm:$0xf]
    %v2632 = vld [vmem:[#allocation9 + $0x8] sm:$0xf]
    %v2633 = vld [vmem:[#allocation9 + $0xc] sm:$0xf]
    %v2634 = vld [vmem:[#allocation9 + $0x10] sm:$0xf]
    %v2635 = vld [vmem:[#allocation9 + $0x14] sm:$0xf]
    %v2636 = vld [vmem:[#allocation9 + $0x18] sm:$0xf]
    %v2637 = vld [vmem:[#allocation9 + $0x1c] sm:$0xf]
    %v2638 = vld [vmem:[#allocation9 + $0x20] sm:$0xf]
    %v2639 = vld [vmem:[#allocation9 + $0x24] sm:$0xf]
    %v2640 = vld [vmem:[#allocation9 + $0x28] sm:$0xf]
    %v2641 = vld [vmem:[#allocation9 + $0x2c] sm:$0xf]
    %v2642 = vld [vmem:[#allocation9 + $0x30] sm:$0xf]
    %v2643 = vld [vmem:[#allocation9 + $0x34] sm:$0xf]
    %v2644 = vld [vmem:[#allocation9 + $0x38] sm:$0xf]
    %v2645 = vld [vmem:[#allocation9 + $0x3c] sm:$0xf]
    %v2646 = vld [vmem:[%s10] sm:$0x1]
    %v2648 = vlaneseq
    %v2649 = vshrl.u32 %v2648, 7
    %v2650 = vsub.s32 0, %v2649
    %v2651 = vrot.slane %v2646, %v2650
    %v2669 = vunpack.c.l.b16 %v2630
    %v2670 = vunpack.c.l.b16 %v2631
    %v2671 = vunpack.c.l.b16 %v2632
    %v2672 = vunpack.c.l.b16 %v2633
    %v2673 = vunpack.c.l.b16 %v2634
    %v2674 = vunpack.c.l.b16 %v2635
    %v2675 = vunpack.c.l.b16 %v2636
    %v2676 = vunpack.c.l.b16 %v2637
    %v2677 = vunpack.c.l.b16 %v2638
    %v2678 = vunpack.c.l.b16 %v2639
    %v2679 = vunpack.c.l.b16 %v2640
    %v2680 = vunpack.c.l.b16 %v2641
    %v2681 = vunpack.c.l.b16 %v2642
    %v2682 = vunpack.c.l.b16 %v2643
    %v2683 = vunpack.c.l.b16 %v2644
    %v2684 = vunpack.c.l.b16 %v2645
    %v2685 = vpack.c.b16 %v2670, %v2669
    %v2686 = vpack.c.b16 %v2672, %v2671
    %v2687 = vpack.c.b16 %v2674, %v2673
    %v2688 = vpack.c.b16 %v2676, %v2675
    %v2689 = vpack.c.b16 %v2678, %v2677
    %v2690 = vpack.c.b16 %v2680, %v2679
    %v2691 = vpack.c.b16 %v2682, %v2681
    %v2692 = vpack.c.b16 %v2684, %v2683
    %2701 = vmatprep.subr.bf16.mxu0 0
    %2702 = vmatpush1.bf16.msra.mxu0 %v2692
    %2703 = vmatprep.subr.bf16.mxu0 0
    %2704 = vmatpush1.bf16.msra.mxu0 %v2691
    %2705 = vmatprep.subr.bf16.mxu0 0
    %2706 = vmatpush1.bf16.msra.mxu0 %v2690
    %2707 = vmatprep.subr.bf16.mxu0 0
    %2708 = vmatpush1.bf16.msra.mxu0 %v2689
    %2709 = vmatprep.subr.bf16.mxu0 0
    %2710 = vmatpush1.bf16.msra.mxu0 %v2688
    %2711 = vmatprep.subr.bf16.mxu0 0
    %2712 = vmatpush1.bf16.msra.mxu0 %v2687
    %2713 = vmatprep.subr.bf16.mxu0 0
    %2714 = vmatpush1.bf16.msra.mxu0 %v2686
    %2715 = vmatprep.subr.bf16.mxu0 0
    %2716 = vmatpush1.bf16.msra.mxu0 %v2685
    %2717 = vmatprep.subr.bf16.mxu0 0
    %2718 = vmatpush2.bf16.msra.mxu0 0
    %2719 = vmatprep.subr.bf16.mxu0 0
    %2720 = vmatpush2.bf16.msra.mxu0 0
    %2721 = vmatprep.subr.bf16.mxu0 0
    %2722 = vmatpush2.bf16.msra.mxu0 0
    %2723 = vmatprep.subr.bf16.mxu0 0
    %2724 = vmatpush2.bf16.msra.mxu0 0
    %2725 = vmatprep.subr.bf16.mxu0 0
    %2726 = vmatpush2.bf16.msra.mxu0 0
    %2727 = vmatprep.subr.bf16.mxu0 0
    %2728 = vmatpush2.bf16.msra.mxu0 0
    %2729 = vmatprep.subr.bf16.mxu0 0
    %2730 = vmatpush2.bf16.msra.mxu0 0
    %2731 = vmatprep.subr.bf16.mxu0 0
    %2732 = vmatpush2.bf16.msra.mxu0 0
    %2733 = vmatprep.mubr.bf16.mxu0 0
    %2734 = vmatmul.mubr.bf16.gmra.mxu0 %v2629
    %v2735 = vpop.f32.mrf.mxu0
    %v2736 = vadd.f32 %v2651, %v2735
    %v2737 = vpop.f32.mrf.mxu0
    %v2738 = vpop.f32.mrf.mxu0
    %v2739 = vadd.f32 %v2651, %v2738
    %v2740 = vpop.f32.mrf.mxu0
    %2741 = vdwg.mxu0
    %v2742 = vpack.c.bf16 %v2739, %v2736
    %v2744 = vunpack.c.l.b16 %v2742
    %v2745 = vunpack.c.h.b16 %v2742
    %v2746 = vpack.c.b16 %v2744, %v2744
    %v2747 = vpack.c.b16 %v2745, %v2745
    %2750 = vst [vmem:[%s11] sm:$0xf] %v2746
    %2751 = vst [vmem:[%s11 + $0x4] sm:$0xf] %v2747
    // Predicated region
    $region66: #{dqn_forward.1} parent=1 // pred_check
      _
    $region67: #{dqn_forward.1} parent=1 // pred_check_branch
      %2753 = sbr.rel (0) target = $region69
    $region68: #{dqn_forward.1} parent=1 // pred_region
      _
    $region69: #{dqn_forward.1} parent=1 // pred_fallthru
      _
    // Predicated region
    $region70: #{dqn_forward.1} parent=1 // pred_check
      _
    $region71: #{dqn_forward.1} parent=1 // pred_check_branch
      %2755 = sbr.rel (0) target = $region73
    $region72: #{dqn_forward.1} parent=1 // pred_region
      _
    $region73: #{dqn_forward.1} parent=1 // pred_fallthru
      _
    %2756 = vsyncpa [#allocation3], 1
    %2757 = vsyncpa [#allocation5], 1
    %2758 = vsyncpa [#allocation8], 1

</llo_original>
